<compile_context>
chip_gen: v5e
topology: v5e:2x2
jax: 0.10.0
libtpu: 0.0.40
codegen_flags: <defaults>
</compile_context>

<pallas_src>
import math

import jax
import jax.numpy as jnp
from jax.experimental import pallas as pl
from jax.experimental.pallas import tpu as pltpu

# ----------------------------- config (small) --------------------------------
B, S, H = 2, 8, 32          # batch, seq_len, hidden_size
NH, HD = 2, 16              # num_heads, head_dim   (NH * HD == H)
FF = 64                     # intermediate (FFN) size
L = 2                       # number of transformer layers
VOCAB = 64                  # synthetic vocab size
MAXPOS = 16                 # max position embeddings
EPS = 1e-12                 # BERT LayerNorm eps

# lane-aligned column offsets inside the per-layer matrix slab (L, H, M1_W)
QKV_OFF, WO_OFF, W1_OFF = 0, 128, 256
M1_W = 3 * 128


# ----------------------------- shared math ----------------------------------
def _layernorm(x, g, b):
    mu = jnp.mean(x, axis=-1, keepdims=True)
    var = jnp.mean(jnp.square(x - mu), axis=-1, keepdims=True)
    return (x - mu) * jax.lax.rsqrt(var + EPS) * g + b


def _gelu(x):
    # TODO(synk): tanh-approximate GELU ("gelu_new"); HF BERT default is exact-erf.
    c = math.sqrt(2.0 / math.pi)
    return 0.5 * x * (1.0 + jnp.tanh(c * (x + 0.044715 * x * x * x)))


# ----------------------------- fused Pallas kernel ---------------------------
def fused_bert_kernel(emb_ref, bias_ref, misc_ref, vecs_ref, m1_ref, m2_ref,
                      out_ref):
    # misc rows: 0 emb_ln_g, 1 emb_ln_b, 2 classifier weight row, 3 classifier bias
    eg = misc_ref[0:1, 0:H]
    eb = misc_ref[1:2, 0:H]

    x = _layernorm(emb_ref[...], eg, eb)                       # (S, H) f32
    bias = bias_ref[...]                                        # (S, S) f32 (pre-broadcast)

    scale = 1.0 / math.sqrt(HD)
    for l in range(L):                                          # static unroll (tiny L)
        vl = vecs_ref[l]                                        # (8, 128)  f32
        m1 = m1_ref[l]                                          # (H, 384)  bf16
        w2 = m2_ref[l]                                          # (FF, H)   bf16

        bqkv = vl[0:1, 0:3 * H]
        bo   = vl[1:2, 0:H]
        g1   = vl[2:3, 0:H]
        b1   = vl[3:4, 0:H]
        bf1  = vl[4:5, 0:FF]
        bf2  = vl[5:6, 0:H]
        g2   = vl[6:7, 0:H]
        b2   = vl[7:8, 0:H]

        wqkv = m1[:, QKV_OFF:QKV_OFF + 3 * H]                   # (H, 3H) bf16
        wo   = m1[:, WO_OFF:WO_OFF + H]                         # (H, H)  bf16
        w1   = m1[:, W1_OFF:W1_OFF + FF]                        # (H, FF) bf16

        # fused Q/K/V projection: one MXU push, f32 accumulate
        qkv = jnp.dot(x.astype(jnp.bfloat16), wqkv,
                      preferred_element_type=jnp.float32) + bqkv      # (S, 3H)

        attn = jnp.zeros((S, H), jnp.float32)
        for h in range(NH):                                     # static unroll (NH = 2)
            q = qkv[:, h * HD:(h + 1) * HD].astype(jnp.bfloat16)
            k = qkv[:, H + h * HD:H + (h + 1) * HD].astype(jnp.bfloat16)
            v = qkv[:, 2 * H + h * HD:2 * H + (h + 1) * HD].astype(jnp.bfloat16)

            # scores, mask bias and softmax stats stay f32
            s = jax.lax.dot_general(q, k, (((1,), (1,)), ((), ())),
                                    preferred_element_type=jnp.float32)
            s = s * scale + bias                                        # (S, S)
            m = jnp.max(s, axis=-1, keepdims=True)
            e = jnp.exp(s - m)
            p = e * pl.reciprocal(jnp.sum(e, axis=-1, keepdims=True), approx=True)

            hv = jnp.dot(p.astype(jnp.bfloat16), v,
                         preferred_element_type=jnp.float32)            # (S, HD)
            # fold the head-concat into the output projection (no XLU concat)
            attn = attn + jnp.dot(hv.astype(jnp.bfloat16),
                                  wo[h * HD:(h + 1) * HD, :],
                                  preferred_element_type=jnp.float32)

        h1 = _layernorm(x + attn + bo, g1, b1)

        ff = _gelu(jnp.dot(h1.astype(jnp.bfloat16), w1,
                           preferred_element_type=jnp.float32) + bf1)   # (S, FF)
        ff = jnp.dot(ff.astype(jnp.bfloat16), w2,
                     preferred_element_type=jnp.float32) + bf2
        x = _layernorm(h1 + ff, g2, b2)

    # classifier on the [CLS] row: VPU reduce instead of an N=1 MXU matmul
    cls = x[0:1, :]                                             # (1, H)
    wc  = misc_ref[2:3, 0:H]                                    # (1, H)
    bc  = misc_ref[3:4, 0:1]                                    # (1, 1)
    out_ref[...] = jnp.sum(cls * wc, axis=-1, keepdims=True) + bc


# ----------------------------- pallas_call glue -------------------------------
def bert_forward(params, input_ids, attention_mask):
    # embedding gather (glue, plain JAX)
    we = jnp.take(params['word_emb'], input_ids, axis=0)            # (B, S, H)
    pe = params['pos_emb'][:S][None, :, :]                          # (1, S, H)
    te = params['type_emb'][0][None, None, :]                       # token_type_ids = 0
    emb = (we + pe + te).astype(jnp.float32)

    # additive attention-mask bias, pre-broadcast ONCE to (B, S, S)
    neg = (1.0 - attention_mask.astype(jnp.float32)) * -1e9         # (B, S)
    bias = jnp.broadcast_to(neg[:, None, :], (B, S, S)).astype(jnp.float32)

    # misc slab (8, 128) f32: emb-LN params + classifier params
    misc = jnp.zeros((8, 128), jnp.float32)
    misc = misc.at[0, :H].set(params['emb_ln_g'][0])
    misc = misc.at[1, :H].set(params['emb_ln_b'][0])
    misc = misc.at[2, :H].set(params['wc'][:, 0])
    misc = misc.at[3, 0].set(params['bc'][0, 0])

    # per-layer vector slab (L, 8, 128) f32: one 128-lane row per tiny vector
    vec_rows = []
    for lp in params['layers']:
        r = jnp.zeros((8, 128), jnp.float32)
        r = r.at[0, :3 * H].set(jnp.concatenate([lp['bq'][0], lp['bk'][0], lp['bv'][0]]))
        r = r.at[1, :H].set(lp['bo'][0])
        r = r.at[2, :H].set(lp['ln1_g'][0])
        r = r.at[3, :H].set(lp['ln1_b'][0])
        r = r.at[4, :FF].set(lp['b1'][0])
        r = r.at[5, :H].set(lp['b2'][0])
        r = r.at[6, :H].set(lp['ln2_g'][0])
        r = r.at[7, :H].set(lp['ln2_b'][0])
        vec_rows.append(r)
    vecs = jnp.stack(vec_rows, axis=0)                               # (L, 8, 128)

    # per-layer matrix slab #1 (L, H, 384) bf16: [wqkv | wo | w1], 128-lane regions
    m1_rows = []
    for lp in params['layers']:
        m = jnp.zeros((H, M1_W), jnp.float32)
        m = m.at[:, QKV_OFF:QKV_OFF + 3 * H].set(
            jnp.concatenate([lp['wq'], lp['wk'], lp['wv']], axis=-1))
        m = m.at[:, WO_OFF:WO_OFF + H].set(lp['wo'])
        m = m.at[:, W1_OFF:W1_OFF + FF].set(lp['w1'])
        m1_rows.append(m)
    m1 = jnp.stack(m1_rows, axis=0).astype(jnp.bfloat16)             # (L, H, 384)

    # per-layer matrix slab #2 (L, FF, H) bf16
    m2 = jnp.stack([lp['w2'] for lp in params['layers']], axis=0).astype(jnp.bfloat16)

    in_specs = [
        pl.BlockSpec((None, S, H),    lambda b: (b, 0, 0)),   # embeddings (per batch)
        pl.BlockSpec((None, S, S),    lambda b: (b, 0, 0)),   # mask bias  (per batch)
        pl.BlockSpec((8, 128),        lambda b: (0, 0)),      # misc slab  (resident)
        pl.BlockSpec((L, 8, 128),     lambda b: (0, 0, 0)),   # per-layer vectors
        pl.BlockSpec((L, H, M1_W),    lambda b: (0, 0, 0)),   # per-layer mats #1
        pl.BlockSpec((L, FF, H),      lambda b: (0, 0, 0)),   # per-layer mats #2
    ]
    out_specs = pl.BlockSpec((None, 1, 1), lambda b: (b, 0, 0))

    out = pl.pallas_call(
        fused_bert_kernel,
        out_shape=jax.ShapeDtypeStruct((B, 1, 1), jnp.float32),
        grid_spec=pltpu.PrefetchScalarGridSpec(
            num_scalar_prefetch=0,
            grid=(B,),                       # batch axis only; layers are a static loop
            in_specs=in_specs,
            out_specs=out_specs,
        ),
        compiler_params=pltpu.CompilerParams(
            dimension_semantics=("parallel",)),   # both TCs on v7x; plain loop elsewhere
    )(emb, bias, misc, vecs, m1, m2)

    return out.reshape(B, 1)


# ----------------------------- reference (plain JAX, f32) ---------------------
def ref_forward(params, input_ids, attention_mask):
    we = jnp.take(params['word_emb'], input_ids, axis=0)
    pe = params['pos_emb'][:S][None, :, :]
    te = params['type_emb'][0][None, None, :]
    x = _layernorm(we + pe + te, params['emb_ln_g'], params['emb_ln_b'])
    mask = attention_mask.astype(jnp.float32)
    bias = ((1.0 - mask) * -1e9)[:, None, None, :]                   # (B,1,1,S)
    for lp in params['layers']:
        q = (x @ lp['wq'] + lp['bq']).reshape(B, S, NH, HD)
        k = (x @ lp['wk'] + lp['bk']).reshape(B, S, NH, HD)
        v = (x @ lp['wv'] + lp['bv']).reshape(B, S, NH, HD)
        s = jnp.einsum('bind,bjnd->bnij', q, k) / math.sqrt(HD) + bias
        p = jax.nn.softmax(s, axis=-1)
        ctx = jnp.einsum('bnij,bjnd->bind', p, v).reshape(B, S, H)
        x = _layernorm(x + ctx @ lp['wo'] + lp['bo'], lp['ln1_g'], lp['ln1_b'])
        ff = _gelu(x @ lp['w1'] + lp['b1']) @ lp['w2'] + lp['b2']
        x = _layernorm(x + ff, lp['ln2_g'], lp['ln2_b'])
    return x[:, 0, :] @ params['wc'] + params['bc']


# ----------------------------- parameter init ---------------------------------
def init_params(key):
    keys = iter(jax.random.split(key, 64))

    def w(shape, scale=0.02):
        return (scale * jax.random.normal(next(keys), shape)).astype(jnp.float32)

    def zeros(shape):
        return jnp.zeros(shape, jnp.float32)

    def ones(shape):
        return jnp.ones(shape, jnp.float32)

    params = {
        'word_emb': w((VOCAB, H)),
        'pos_emb': w((MAXPOS, H)),
        'type_emb': w((2, H)),
        'emb_ln_g': ones((1, H)),
        'emb_ln_b': zeros((1, H)),
        'layers': [],
        'wc': w((H, 1)),
        'bc': zeros((1, 1)),
    }
    for _ in range(L):
        params['layers'].append(dict(
            wq=w((H, H)), bq=zeros((1, H)),
            wk=w((H, H)), bk=zeros((1, H)),
            wv=w((H, H)), bv=zeros((1, H)),
            wo=w((H, H)), bo=zeros((1, H)),
            ln1_g=ones((1, H)), ln1_b=zeros((1, H)),
            w1=w((H, FF)), b1=zeros((1, FF)),
            w2=w((FF, H)), b2=zeros((1, H)),
            ln2_g=ones((1, H)), ln2_b=zeros((1, H)),
        ))
    return params


# ----------------------------- main --------------------------------------------
if __name__ == "__main__":
    key = jax.random.PRNGKey(0)
    pkey, ikey = jax.random.split(key)
    params = init_params(pkey)

    input_ids = jax.random.randint(ikey, (B, S), 0, VOCAB, dtype=jnp.int32)
    input_ids = input_ids.at[:, 0].set(2)                           # fake [CLS] id
    attention_mask = jnp.array([[1] * S,
                                [1] * (S - 2) + [0] * 2], dtype=jnp.float32)

    logits = bert_forward(params, input_ids, attention_mask)
    logits = jax.block_until_ready(logits)

    ref = ref_forward(params, input_ids, attention_mask)
    assert logits.shape == (B, 1), logits.shape
    # bf16 MXU operands in the kernel vs. pure-f32 reference -> loosened tolerance
    assert jnp.allclose(logits, ref, atol=1e-2, rtol=5e-2), (logits, ref)

    print("KERNEL_OK")
</pallas_src>

<mosaic_0001>
module attributes {stable_mosaic.version = 11 : i64} {
  func.func @fused_bert_kernel(%arg0: i32, %arg1: memref<1x8x32xf32, #tpu.memory_space<vmem>>, %arg2: memref<1x8x8xf32, #tpu.memory_space<vmem>>, %arg3: memref<8x128xf32, #tpu.memory_space<vmem>>, %arg4: memref<2x8x128xf32, #tpu.memory_space<vmem>>, %arg5: memref<2x32x384xbf16, #tpu.memory_space<vmem>>, %arg6: memref<2x64x32xbf16, #tpu.memory_space<vmem>>, %arg7: memref<1x1x1xf32, #tpu.memory_space<vmem>>) attributes {dimension_semantics = [#tpu.dimension_semantics<parallel>], iteration_bounds = array<i64: 2>, scalar_prefetch = 0 : i64, scratch_operands = 0 : i64, tpu.core_type = #tpu.core_type<tc>, window_params = [{transform_indices = @transform_0, window_bounds = array<i64: 1, 8, 32>}, {transform_indices = @transform_1, window_bounds = array<i64: 1, 8, 8>}, {pipeline_mode = #tpu.pipeline_mode<synchronous>, transform_indices = @transform_2, window_bounds = array<i64: 8, 128>}, {pipeline_mode = #tpu.pipeline_mode<synchronous>, transform_indices = @transform_3, window_bounds = array<i64: 2, 8, 128>}, {pipeline_mode = #tpu.pipeline_mode<synchronous>, transform_indices = @transform_4, window_bounds = array<i64: 2, 32, 384>}, {pipeline_mode = #tpu.pipeline_mode<synchronous>, transform_indices = @transform_5, window_bounds = array<i64: 2, 64, 32>}, {transform_indices = @transform_6, window_bounds = array<i64: 1, 1, 1>}]} {
    %c0 = arith.constant 0 : index
    %c0_0 = arith.constant 0 : index
    %0 = vector.load %arg3[%c0, %c0_0] : memref<8x128xf32, #tpu.memory_space<vmem>>, vector<1x32xf32>
    %c1 = arith.constant 1 : index
    %c0_1 = arith.constant 0 : index
    %1 = vector.load %arg3[%c1, %c0_1] : memref<8x128xf32, #tpu.memory_space<vmem>>, vector<1x32xf32>
    %c0_2 = arith.constant 0 : index
    %c0_3 = arith.constant 0 : index
    %c0_4 = arith.constant 0 : index
    %2 = vector.load %arg1[%c0_2, %c0_3, %c0_4] : memref<1x8x32xf32, #tpu.memory_space<vmem>>, vector<1x8x32xf32>
    %3 = vector.shape_cast %2 : vector<1x8x32xf32> to vector<8x32xf32>
    %cst = arith.constant dense<0.000000e+00> : vector<8xf32>
    %4 = vector.multi_reduction <add>, %3, %cst [1] : vector<8x32xf32> to vector<8xf32>
    %5 = vector.shape_cast %4 : vector<8xf32> to vector<8x1xf32>
    %cst_5 = arith.constant 3.200000e+01 : f32
    %6 = vector.broadcast %cst_5 : f32 to vector<8x1xf32>
    %7 = arith.divf %5, %6 : vector<8x1xf32>
    %8 = vector.broadcast %7 : vector<8x1xf32> to vector<8x32xf32>
    %9 = arith.subf %3, %8 : vector<8x32xf32>
    %10 = arith.mulf %9, %9 : vector<8x32xf32>
    %cst_6 = arith.constant dense<0.000000e+00> : vector<8xf32>
    %11 = vector.multi_reduction <add>, %10, %cst_6 [1] : vector<8x32xf32> to vector<8xf32>
    %12 = vector.shape_cast %11 : vector<8xf32> to vector<8x1xf32>
    %cst_7 = arith.constant 3.200000e+01 : f32
    %13 = vector.broadcast %cst_7 : f32 to vector<8x1xf32>
    %14 = arith.divf %12, %13 : vector<8x1xf32>
    %15 = vector.broadcast %7 : vector<8x1xf32> to vector<8x32xf32>
    %16 = arith.subf %3, %15 : vector<8x32xf32>
    %cst_8 = arith.constant 9.99999996E-13 : f32
    %17 = vector.broadcast %cst_8 : f32 to vector<8x1xf32>
    %18 = arith.addf %14, %17 : vector<8x1xf32>
    %19 = math.rsqrt %18 : vector<8x1xf32>
    %20 = vector.broadcast %19 : vector<8x1xf32> to vector<8x32xf32>
    %21 = arith.mulf %16, %20 : vector<8x32xf32>
    %22 = vector.broadcast %0 : vector<1x32xf32> to vector<8x32xf32>
    %23 = arith.mulf %21, %22 : vector<8x32xf32>
    %24 = vector.broadcast %1 : vector<1x32xf32> to vector<8x32xf32>
    %25 = arith.addf %23, %24 : vector<8x32xf32>
    %c0_9 = arith.constant 0 : index
    %c0_10 = arith.constant 0 : index
    %c0_11 = arith.constant 0 : index
    %26 = vector.load %arg2[%c0_9, %c0_10, %c0_11] : memref<1x8x8xf32, #tpu.memory_space<vmem>>, vector<1x8x8xf32>
    %27 = vector.shape_cast %26 : vector<1x8x8xf32> to vector<8x8xf32>
    %c0_12 = arith.constant 0 : index
    %c0_13 = arith.constant 0 : index
    %c0_14 = arith.constant 0 : index
    %28 = vector.load %arg4[%c0_12, %c0_13, %c0_14] : memref<2x8x128xf32, #tpu.memory_space<vmem>>, vector<1x8x128xf32>
    %29 = vector.shape_cast %28 : vector<1x8x128xf32> to vector<8x128xf32>
    %c0_15 = arith.constant 0 : index
    %c0_16 = arith.constant 0 : index
    %c0_17 = arith.constant 0 : index
    %30 = vector.load %arg5[%c0_15, %c0_16, %c0_17] : memref<2x32x384xbf16, #tpu.memory_space<vmem>>, vector<1x32x384xbf16>
    %31 = vector.shape_cast %30 : vector<1x32x384xbf16> to vector<32x384xbf16>
    %c0_18 = arith.constant 0 : index
    %c0_19 = arith.constant 0 : index
    %c0_20 = arith.constant 0 : index
    %32 = vector.load %arg6[%c0_18, %c0_19, %c0_20] : memref<2x64x32xbf16, #tpu.memory_space<vmem>>, vector<1x64x32xbf16>
    %33 = vector.shape_cast %32 : vector<1x64x32xbf16> to vector<64x32xbf16>
    %34 = vector.extract_strided_slice %29 {offsets = [0, 0], sizes = [1, 96], strides = [1, 1]} : vector<8x128xf32> to vector<1x96xf32>
    %35 = vector.extract_strided_slice %29 {offsets = [1, 0], sizes = [1, 32], strides = [1, 1]} : vector<8x128xf32> to vector<1x32xf32>
    %36 = vector.extract_strided_slice %29 {offsets = [2, 0], sizes = [1, 32], strides = [1, 1]} : vector<8x128xf32> to vector<1x32xf32>
    %37 = vector.extract_strided_slice %29 {offsets = [3, 0], sizes = [1, 32], strides = [1, 1]} : vector<8x128xf32> to vector<1x32xf32>
    %38 = vector.extract_strided_slice %29 {offsets = [4, 0], sizes = [1, 64], strides = [1, 1]} : vector<8x128xf32> to vector<1x64xf32>
    %39 = vector.extract_strided_slice %29 {offsets = [5, 0], sizes = [1, 32], strides = [1, 1]} : vector<8x128xf32> to vector<1x32xf32>
    %40 = vector.extract_strided_slice %29 {offsets = [6, 0], sizes = [1, 32], strides = [1, 1]} : vector<8x128xf32> to vector<1x32xf32>
    %41 = vector.extract_strided_slice %29 {offsets = [7, 0], sizes = [1, 32], strides = [1, 1]} : vector<8x128xf32> to vector<1x32xf32>
    %42 = vector.extract_strided_slice %31 {offsets = [0, 0], sizes = [32, 96], strides = [1, 1]} : vector<32x384xbf16> to vector<32x96xbf16>
    %43 = vector.extract_strided_slice %31 {offsets = [0, 128], sizes = [32, 32], strides = [1, 1]} : vector<32x384xbf16> to vector<32x32xbf16>
    %44 = vector.extract_strided_slice %31 {offsets = [0, 256], sizes = [32, 64], strides = [1, 1]} : vector<32x384xbf16> to vector<32x64xbf16>
    %45 = arith.truncf %25 : vector<8x32xf32> to vector<8x32xbf16>
    %cst_21 = arith.constant dense<0.000000e+00> : vector<8x96xf32>
    %46 = tpu.matmul %45, %42, %cst_21 {dimension_numbers = #tpu.dot_dimension_numbers<[1], [0], [0], [1], [0, 0, 1, 1], [], []>} : vector<8x32xbf16>, vector<32x96xbf16>, vector<8x96xf32> -> vector<8x96xf32>
    %47 = vector.broadcast %34 : vector<1x96xf32> to vector<8x96xf32>
    %48 = arith.addf %46, %47 : vector<8x96xf32>
    %cst_22 = arith.constant 0.000000e+00 : f32
    %49 = vector.broadcast %cst_22 : f32 to vector<8x32xf32>
    %50 = vector.extract_strided_slice %48 {offsets = [0, 0], sizes = [8, 16], strides = [1, 1]} : vector<8x96xf32> to vector<8x16xf32>
    %51 = arith.truncf %50 : vector<8x16xf32> to vector<8x16xbf16>
    %52 = vector.extract_strided_slice %48 {offsets = [0, 32], sizes = [8, 16], strides = [1, 1]} : vector<8x96xf32> to vector<8x16xf32>
    %53 = arith.truncf %52 : vector<8x16xf32> to vector<8x16xbf16>
    %54 = vector.extract_strided_slice %48 {offsets = [0, 64], sizes = [8, 16], strides = [1, 1]} : vector<8x96xf32> to vector<8x16xf32>
    %55 = arith.truncf %54 : vector<8x16xf32> to vector<8x16xbf16>
    %cst_23 = arith.constant dense<0.000000e+00> : vector<8x8xf32>
    %56 = tpu.matmul %51, %53, %cst_23 {dimension_numbers = #tpu.dot_dimension_numbers<[1], [1], [0], [0], [0, 0, 1, 0], [], []>} : vector<8x16xbf16>, vector<8x16xbf16>, vector<8x8xf32> -> vector<8x8xf32>
    %cst_24 = arith.constant 2.500000e-01 : f32
    %57 = vector.broadcast %cst_24 : f32 to vector<8x8xf32>
    %58 = arith.mulf %56, %57 : vector<8x8xf32>
    %59 = arith.addf %58, %27 : vector<8x8xf32>
    %cst_25 = arith.constant dense<0xFF800000> : vector<8xf32>
    %60 = vector.multi_reduction <maximumf>, %59, %cst_25 [1] : vector<8x8xf32> to vector<8xf32>
    %61 = vector.shape_cast %60 : vector<8xf32> to vector<8x1xf32>
    %62 = vector.broadcast %61 : vector<8x1xf32> to vector<8x8xf32>
    %63 = arith.subf %59, %62 : vector<8x8xf32>
    %64 = math.exp %63 : vector<8x8xf32>
    %cst_26 = arith.constant dense<0.000000e+00> : vector<8xf32>
    %65 = vector.multi_reduction <add>, %64, %cst_26 [1] : vector<8x8xf32> to vector<8xf32>
    %66 = vector.shape_cast %65 : vector<8xf32> to vector<8x1xf32>
    %67 = tpu.reciprocal %66 {approx = true} : vector<8x1xf32> -> vector<8x1xf32>
    %68 = vector.broadcast %67 : vector<8x1xf32> to vector<8x8xf32>
    %69 = arith.mulf %64, %68 : vector<8x8xf32>
    %70 = arith.truncf %69 : vector<8x8xf32> to vector<8x8xbf16>
    %cst_27 = arith.constant dense<0.000000e+00> : vector<8x16xf32>
    %71 = tpu.matmul %70, %55, %cst_27 {dimension_numbers = #tpu.dot_dimension_numbers<[1], [0], [0], [1], [0, 0, 1, 1], [], []>} : vector<8x8xbf16>, vector<8x16xbf16>, vector<8x16xf32> -> vector<8x16xf32>
    %72 = arith.truncf %71 : vector<8x16xf32> to vector<8x16xbf16>
    %73 = vector.extract_strided_slice %43 {offsets = [0, 0], sizes = [16, 32], strides = [1, 1]} : vector<32x32xbf16> to vector<16x32xbf16>
    %cst_28 = arith.constant dense<0.000000e+00> : vector<8x32xf32>
    %74 = tpu.matmul %72, %73, %cst_28 {dimension_numbers = #tpu.dot_dimension_numbers<[1], [0], [0], [1], [0, 0, 1, 1], [], []>} : vector<8x16xbf16>, vector<16x32xbf16>, vector<8x32xf32> -> vector<8x32xf32>
    %75 = arith.addf %49, %74 : vector<8x32xf32>
    %76 = vector.extract_strided_slice %48 {offsets = [0, 16], sizes = [8, 16], strides = [1, 1]} : vector<8x96xf32> to vector<8x16xf32>
    %77 = arith.truncf %76 : vector<8x16xf32> to vector<8x16xbf16>
    %78 = vector.extract_strided_slice %48 {offsets = [0, 48], sizes = [8, 16], strides = [1, 1]} : vector<8x96xf32> to vector<8x16xf32>
    %79 = arith.truncf %78 : vector<8x16xf32> to vector<8x16xbf16>
    %80 = vector.extract_strided_slice %48 {offsets = [0, 80], sizes = [8, 16], strides = [1, 1]} : vector<8x96xf32> to vector<8x16xf32>
    %81 = arith.truncf %80 : vector<8x16xf32> to vector<8x16xbf16>
    %cst_29 = arith.constant dense<0.000000e+00> : vector<8x8xf32>
    %82 = tpu.matmul %77, %79, %cst_29 {dimension_numbers = #tpu.dot_dimension_numbers<[1], [1], [0], [0], [0, 0, 1, 0], [], []>} : vector<8x16xbf16>, vector<8x16xbf16>, vector<8x8xf32> -> vector<8x8xf32>
    %cst_30 = arith.constant 2.500000e-01 : f32
    %83 = vector.broadcast %cst_30 : f32 to vector<8x8xf32>
    %84 = arith.mulf %82, %83 : vector<8x8xf32>
    %85 = arith.addf %84, %27 : vector<8x8xf32>
    %cst_31 = arith.constant dense<0xFF800000> : vector<8xf32>
    %86 = vector.multi_reduction <maximumf>, %85, %cst_31 [1] : vector<8x8xf32> to vector<8xf32>
    %87 = vector.shape_cast %86 : vector<8xf32> to vector<8x1xf32>
    %88 = vector.broadcast %87 : vector<8x1xf32> to vector<8x8xf32>
    %89 = arith.subf %85, %88 : vector<8x8xf32>
    %90 = math.exp %89 : vector<8x8xf32>
    %cst_32 = arith.constant dense<0.000000e+00> : vector<8xf32>
    %91 = vector.multi_reduction <add>, %90, %cst_32 [1] : vector<8x8xf32> to vector<8xf32>
    %92 = vector.shape_cast %91 : vector<8xf32> to vector<8x1xf32>
    %93 = tpu.reciprocal %92 {approx = true} : vector<8x1xf32> -> vector<8x1xf32>
    %94 = vector.broadcast %93 : vector<8x1xf32> to vector<8x8xf32>
    %95 = arith.mulf %90, %94 : vector<8x8xf32>
    %96 = arith.truncf %95 : vector<8x8xf32> to vector<8x8xbf16>
    %cst_33 = arith.constant dense<0.000000e+00> : vector<8x16xf32>
    %97 = tpu.matmul %96, %81, %cst_33 {dimension_numbers = #tpu.dot_dimension_numbers<[1], [0], [0], [1], [0, 0, 1, 1], [], []>} : vector<8x8xbf16>, vector<8x16xbf16>, vector<8x16xf32> -> vector<8x16xf32>
    %98 = arith.truncf %97 : vector<8x16xf32> to vector<8x16xbf16>
    %99 = vector.extract_strided_slice %43 {offsets = [16, 0], sizes = [16, 32], strides = [1, 1]} : vector<32x32xbf16> to vector<16x32xbf16>
    %cst_34 = arith.constant dense<0.000000e+00> : vector<8x32xf32>
    %100 = tpu.matmul %98, %99, %cst_34 {dimension_numbers = #tpu.dot_dimension_numbers<[1], [0], [0], [1], [0, 0, 1, 1], [], []>} : vector<8x16xbf16>, vector<16x32xbf16>, vector<8x32xf32> -> vector<8x32xf32>
    %101 = arith.addf %75, %100 : vector<8x32xf32>
    %102 = arith.addf %25, %101 : vector<8x32xf32>
    %103 = vector.broadcast %35 : vector<1x32xf32> to vector<8x32xf32>
    %104 = arith.addf %102, %103 : vector<8x32xf32>
    %cst_35 = arith.constant dense<0.000000e+00> : vector<8xf32>
    %105 = vector.multi_reduction <add>, %104, %cst_35 [1] : vector<8x32xf32> to vector<8xf32>
    %106 = vector.shape_cast %105 : vector<8xf32> to vector<8x1xf32>
    %cst_36 = arith.constant 3.200000e+01 : f32
    %107 = vector.broadcast %cst_36 : f32 to vector<8x1xf32>
    %108 = arith.divf %106, %107 : vector<8x1xf32>
    %109 = vector.broadcast %108 : vector<8x1xf32> to vector<8x32xf32>
    %110 = arith.subf %104, %109 : vector<8x32xf32>
    %111 = arith.mulf %110, %110 : vector<8x32xf32>
    %cst_37 = arith.constant dense<0.000000e+00> : vector<8xf32>
    %112 = vector.multi_reduction <add>, %111, %cst_37 [1] : vector<8x32xf32> to vector<8xf32>
    %113 = vector.shape_cast %112 : vector<8xf32> to vector<8x1xf32>
    %cst_38 = arith.constant 3.200000e+01 : f32
    %114 = vector.broadcast %cst_38 : f32 to vector<8x1xf32>
    %115 = arith.divf %113, %114 : vector<8x1xf32>
    %116 = vector.broadcast %108 : vector<8x1xf32> to vector<8x32xf32>
    %117 = arith.subf %104, %116 : vector<8x32xf32>
    %cst_39 = arith.constant 9.99999996E-13 : f32
    %118 = vector.broadcast %cst_39 : f32 to vector<8x1xf32>
    %119 = arith.addf %115, %118 : vector<8x1xf32>
    %120 = math.rsqrt %119 : vector<8x1xf32>
    %121 = vector.broadcast %120 : vector<8x1xf32> to vector<8x32xf32>
    %122 = arith.mulf %117, %121 : vector<8x32xf32>
    %123 = vector.broadcast %36 : vector<1x32xf32> to vector<8x32xf32>
    %124 = arith.mulf %122, %123 : vector<8x32xf32>
    %125 = vector.broadcast %37 : vector<1x32xf32> to vector<8x32xf32>
    %126 = arith.addf %124, %125 : vector<8x32xf32>
    %127 = arith.truncf %126 : vector<8x32xf32> to vector<8x32xbf16>
    %cst_40 = arith.constant dense<0.000000e+00> : vector<8x64xf32>
    %128 = tpu.matmul %127, %44, %cst_40 {dimension_numbers = #tpu.dot_dimension_numbers<[1], [0], [0], [1], [0, 0, 1, 1], [], []>} : vector<8x32xbf16>, vector<32x64xbf16>, vector<8x64xf32> -> vector<8x64xf32>
    %129 = vector.broadcast %38 : vector<1x64xf32> to vector<8x64xf32>
    %130 = arith.addf %128, %129 : vector<8x64xf32>
    %cst_41 = arith.constant 5.000000e-01 : f32
    %131 = vector.broadcast %cst_41 : f32 to vector<8x64xf32>
    %132 = arith.mulf %131, %130 : vector<8x64xf32>
    %cst_42 = arith.constant 4.471500e-02 : f32
    %133 = vector.broadcast %cst_42 : f32 to vector<8x64xf32>
    %134 = arith.mulf %133, %130 : vector<8x64xf32>
    %135 = arith.mulf %134, %130 : vector<8x64xf32>
    %136 = arith.mulf %135, %130 : vector<8x64xf32>
    %137 = arith.addf %130, %136 : vector<8x64xf32>
    %cst_43 = arith.constant 0.797884583 : f32
    %138 = vector.broadcast %cst_43 : f32 to vector<8x64xf32>
    %139 = arith.mulf %138, %137 : vector<8x64xf32>
    %140 = math.tanh %139 : vector<8x64xf32>
    %cst_44 = arith.constant 1.000000e+00 : f32
    %141 = vector.broadcast %cst_44 : f32 to vector<8x64xf32>
    %142 = arith.addf %141, %140 : vector<8x64xf32>
    %143 = arith.mulf %132, %142 : vector<8x64xf32>
    %144 = arith.truncf %143 : vector<8x64xf32> to vector<8x64xbf16>
    %cst_45 = arith.constant dense<0.000000e+00> : vector<8x32xf32>
    %145 = tpu.matmul %144, %33, %cst_45 {dimension_numbers = #tpu.dot_dimension_numbers<[1], [0], [0], [1], [0, 0, 1, 1], [], []>} : vector<8x64xbf16>, vector<64x32xbf16>, vector<8x32xf32> -> vector<8x32xf32>
    %146 = vector.broadcast %39 : vector<1x32xf32> to vector<8x32xf32>
    %147 = arith.addf %145, %146 : vector<8x32xf32>
    %148 = arith.addf %126, %147 : vector<8x32xf32>
    %cst_46 = arith.constant dense<0.000000e+00> : vector<8xf32>
    %149 = vector.multi_reduction <add>, %148, %cst_46 [1] : vector<8x32xf32> to vector<8xf32>
    %150 = vector.shape_cast %149 : vector<8xf32> to vector<8x1xf32>
    %cst_47 = arith.constant 3.200000e+01 : f32
    %151 = vector.broadcast %cst_47 : f32 to vector<8x1xf32>
    %152 = arith.divf %150, %151 : vector<8x1xf32>
    %153 = vector.broadcast %152 : vector<8x1xf32> to vector<8x32xf32>
    %154 = arith.subf %148, %153 : vector<8x32xf32>
    %155 = arith.mulf %154, %154 : vector<8x32xf32>
    %cst_48 = arith.constant dense<0.000000e+00> : vector<8xf32>
    %156 = vector.multi_reduction <add>, %155, %cst_48 [1] : vector<8x32xf32> to vector<8xf32>
    %157 = vector.shape_cast %156 : vector<8xf32> to vector<8x1xf32>
    %cst_49 = arith.constant 3.200000e+01 : f32
    %158 = vector.broadcast %cst_49 : f32 to vector<8x1xf32>
    %159 = arith.divf %157, %158 : vector<8x1xf32>
    %160 = vector.broadcast %152 : vector<8x1xf32> to vector<8x32xf32>
    %161 = arith.subf %148, %160 : vector<8x32xf32>
    %cst_50 = arith.constant 9.99999996E-13 : f32
    %162 = vector.broadcast %cst_50 : f32 to vector<8x1xf32>
    %163 = arith.addf %159, %162 : vector<8x1xf32>
    %164 = math.rsqrt %163 : vector<8x1xf32>
    %165 = vector.broadcast %164 : vector<8x1xf32> to vector<8x32xf32>
    %166 = arith.mulf %161, %165 : vector<8x32xf32>
    %167 = vector.broadcast %40 : vector<1x32xf32> to vector<8x32xf32>
    %168 = arith.mulf %166, %167 : vector<8x32xf32>
    %169 = vector.broadcast %41 : vector<1x32xf32> to vector<8x32xf32>
    %170 = arith.addf %168, %169 : vector<8x32xf32>
    %c1_51 = arith.constant 1 : index
    %c0_52 = arith.constant 0 : index
    %c0_53 = arith.constant 0 : index
    %171 = vector.load %arg4[%c1_51, %c0_52, %c0_53] : memref<2x8x128xf32, #tpu.memory_space<vmem>>, vector<1x8x128xf32>
    %172 = vector.shape_cast %171 : vector<1x8x128xf32> to vector<8x128xf32>
    %c1_54 = arith.constant 1 : index
    %c0_55 = arith.constant 0 : index
    %c0_56 = arith.constant 0 : index
    %173 = vector.load %arg5[%c1_54, %c0_55, %c0_56] : memref<2x32x384xbf16, #tpu.memory_space<vmem>>, vector<1x32x384xbf16>
    %174 = vector.shape_cast %173 : vector<1x32x384xbf16> to vector<32x384xbf16>
    %c1_57 = arith.constant 1 : index
    %c0_58 = arith.constant 0 : index
    %c0_59 = arith.constant 0 : index
    %175 = vector.load %arg6[%c1_57, %c0_58, %c0_59] : memref<2x64x32xbf16, #tpu.memory_space<vmem>>, vector<1x64x32xbf16>
    %176 = vector.shape_cast %175 : vector<1x64x32xbf16> to vector<64x32xbf16>
    %177 = vector.extract_strided_slice %172 {offsets = [0, 0], sizes = [1, 96], strides = [1, 1]} : vector<8x128xf32> to vector<1x96xf32>
    %178 = vector.extract_strided_slice %172 {offsets = [1, 0], sizes = [1, 32], strides = [1, 1]} : vector<8x128xf32> to vector<1x32xf32>
    %179 = vector.extract_strided_slice %172 {offsets = [2, 0], sizes = [1, 32], strides = [1, 1]} : vector<8x128xf32> to vector<1x32xf32>
    %180 = vector.extract_strided_slice %172 {offsets = [3, 0], sizes = [1, 32], strides = [1, 1]} : vector<8x128xf32> to vector<1x32xf32>
    %181 = vector.extract_strided_slice %172 {offsets = [4, 0], sizes = [1, 64], strides = [1, 1]} : vector<8x128xf32> to vector<1x64xf32>
    %182 = vector.extract_strided_slice %172 {offsets = [5, 0], sizes = [1, 32], strides = [1, 1]} : vector<8x128xf32> to vector<1x32xf32>
    %183 = vector.extract_strided_slice %172 {offsets = [6, 0], sizes = [1, 32], strides = [1, 1]} : vector<8x128xf32> to vector<1x32xf32>
    %184 = vector.extract_strided_slice %172 {offsets = [7, 0], sizes = [1, 32], strides = [1, 1]} : vector<8x128xf32> to vector<1x32xf32>
    %185 = vector.extract_strided_slice %174 {offsets = [0, 0], sizes = [32, 96], strides = [1, 1]} : vector<32x384xbf16> to vector<32x96xbf16>
    %186 = vector.extract_strided_slice %174 {offsets = [0, 128], sizes = [32, 32], strides = [1, 1]} : vector<32x384xbf16> to vector<32x32xbf16>
    %187 = vector.extract_strided_slice %174 {offsets = [0, 256], sizes = [32, 64], strides = [1, 1]} : vector<32x384xbf16> to vector<32x64xbf16>
    %188 = arith.truncf %170 : vector<8x32xf32> to vector<8x32xbf16>
    %cst_60 = arith.constant dense<0.000000e+00> : vector<8x96xf32>
    %189 = tpu.matmul %188, %185, %cst_60 {dimension_numbers = #tpu.dot_dimension_numbers<[1], [0], [0], [1], [0, 0, 1, 1], [], []>} : vector<8x32xbf16>, vector<32x96xbf16>, vector<8x96xf32> -> vector<8x96xf32>
    %190 = vector.broadcast %177 : vector<1x96xf32> to vector<8x96xf32>
    %191 = arith.addf %189, %190 : vector<8x96xf32>
    %cst_61 = arith.constant 0.000000e+00 : f32
    %192 = vector.broadcast %cst_61 : f32 to vector<8x32xf32>
    %193 = vector.extract_strided_slice %191 {offsets = [0, 0], sizes = [8, 16], strides = [1, 1]} : vector<8x96xf32> to vector<8x16xf32>
    %194 = arith.truncf %193 : vector<8x16xf32> to vector<8x16xbf16>
    %195 = vector.extract_strided_slice %191 {offsets = [0, 32], sizes = [8, 16], strides = [1, 1]} : vector<8x96xf32> to vector<8x16xf32>
    %196 = arith.truncf %195 : vector<8x16xf32> to vector<8x16xbf16>
    %197 = vector.extract_strided_slice %191 {offsets = [0, 64], sizes = [8, 16], strides = [1, 1]} : vector<8x96xf32> to vector<8x16xf32>
    %198 = arith.truncf %197 : vector<8x16xf32> to vector<8x16xbf16>
    %cst_62 = arith.constant dense<0.000000e+00> : vector<8x8xf32>
    %199 = tpu.matmul %194, %196, %cst_62 {dimension_numbers = #tpu.dot_dimension_numbers<[1], [1], [0], [0], [0, 0, 1, 0], [], []>} : vector<8x16xbf16>, vector<8x16xbf16>, vector<8x8xf32> -> vector<8x8xf32>
    %cst_63 = arith.constant 2.500000e-01 : f32
    %200 = vector.broadcast %cst_63 : f32 to vector<8x8xf32>
    %201 = arith.mulf %199, %200 : vector<8x8xf32>
    %202 = arith.addf %201, %27 : vector<8x8xf32>
    %cst_64 = arith.constant dense<0xFF800000> : vector<8xf32>
    %203 = vector.multi_reduction <maximumf>, %202, %cst_64 [1] : vector<8x8xf32> to vector<8xf32>
    %204 = vector.shape_cast %203 : vector<8xf32> to vector<8x1xf32>
    %205 = vector.broadcast %204 : vector<8x1xf32> to vector<8x8xf32>
    %206 = arith.subf %202, %205 : vector<8x8xf32>
    %207 = math.exp %206 : vector<8x8xf32>
    %cst_65 = arith.constant dense<0.000000e+00> : vector<8xf32>
    %208 = vector.multi_reduction <add>, %207, %cst_65 [1] : vector<8x8xf32> to vector<8xf32>
    %209 = vector.shape_cast %208 : vector<8xf32> to vector<8x1xf32>
    %210 = tpu.reciprocal %209 {approx = true} : vector<8x1xf32> -> vector<8x1xf32>
    %211 = vector.broadcast %210 : vector<8x1xf32> to vector<8x8xf32>
    %212 = arith.mulf %207, %211 : vector<8x8xf32>
    %213 = arith.truncf %212 : vector<8x8xf32> to vector<8x8xbf16>
    %cst_66 = arith.constant dense<0.000000e+00> : vector<8x16xf32>
    %214 = tpu.matmul %213, %198, %cst_66 {dimension_numbers = #tpu.dot_dimension_numbers<[1], [0], [0], [1], [0, 0, 1, 1], [], []>} : vector<8x8xbf16>, vector<8x16xbf16>, vector<8x16xf32> -> vector<8x16xf32>
    %215 = arith.truncf %214 : vector<8x16xf32> to vector<8x16xbf16>
    %216 = vector.extract_strided_slice %186 {offsets = [0, 0], sizes = [16, 32], strides = [1, 1]} : vector<32x32xbf16> to vector<16x32xbf16>
    %cst_67 = arith.constant dense<0.000000e+00> : vector<8x32xf32>
    %217 = tpu.matmul %215, %216, %cst_67 {dimension_numbers = #tpu.dot_dimension_numbers<[1], [0], [0], [1], [0, 0, 1, 1], [], []>} : vector<8x16xbf16>, vector<16x32xbf16>, vector<8x32xf32> -> vector<8x32xf32>
    %218 = arith.addf %192, %217 : vector<8x32xf32>
    %219 = vector.extract_strided_slice %191 {offsets = [0, 16], sizes = [8, 16], strides = [1, 1]} : vector<8x96xf32> to vector<8x16xf32>
    %220 = arith.truncf %219 : vector<8x16xf32> to vector<8x16xbf16>
    %221 = vector.extract_strided_slice %191 {offsets = [0, 48], sizes = [8, 16], strides = [1, 1]} : vector<8x96xf32> to vector<8x16xf32>
    %222 = arith.truncf %221 : vector<8x16xf32> to vector<8x16xbf16>
    %223 = vector.extract_strided_slice %191 {offsets = [0, 80], sizes = [8, 16], strides = [1, 1]} : vector<8x96xf32> to vector<8x16xf32>
    %224 = arith.truncf %223 : vector<8x16xf32> to vector<8x16xbf16>
    %cst_68 = arith.constant dense<0.000000e+00> : vector<8x8xf32>
    %225 = tpu.matmul %220, %222, %cst_68 {dimension_numbers = #tpu.dot_dimension_numbers<[1], [1], [0], [0], [0, 0, 1, 0], [], []>} : vector<8x16xbf16>, vector<8x16xbf16>, vector<8x8xf32> -> vector<8x8xf32>
    %cst_69 = arith.constant 2.500000e-01 : f32
    %226 = vector.broadcast %cst_69 : f32 to vector<8x8xf32>
    %227 = arith.mulf %225, %226 : vector<8x8xf32>
    %228 = arith.addf %227, %27 : vector<8x8xf32>
    %cst_70 = arith.constant dense<0xFF800000> : vector<8xf32>
    %229 = vector.multi_reduction <maximumf>, %228, %cst_70 [1] : vector<8x8xf32> to vector<8xf32>
    %230 = vector.shape_cast %229 : vector<8xf32> to vector<8x1xf32>
    %231 = vector.broadcast %230 : vector<8x1xf32> to vector<8x8xf32>
    %232 = arith.subf %228, %231 : vector<8x8xf32>
    %233 = math.exp %232 : vector<8x8xf32>
    %cst_71 = arith.constant dense<0.000000e+00> : vector<8xf32>
    %234 = vector.multi_reduction <add>, %233, %cst_71 [1] : vector<8x8xf32> to vector<8xf32>
    %235 = vector.shape_cast %234 : vector<8xf32> to vector<8x1xf32>
    %236 = tpu.reciprocal %235 {approx = true} : vector<8x1xf32> -> vector<8x1xf32>
    %237 = vector.broadcast %236 : vector<8x1xf32> to vector<8x8xf32>
    %238 = arith.mulf %233, %237 : vector<8x8xf32>
    %239 = arith.truncf %238 : vector<8x8xf32> to vector<8x8xbf16>
    %cst_72 = arith.constant dense<0.000000e+00> : vector<8x16xf32>
    %240 = tpu.matmul %239, %224, %cst_72 {dimension_numbers = #tpu.dot_dimension_numbers<[1], [0], [0], [1], [0, 0, 1, 1], [], []>} : vector<8x8xbf16>, vector<8x16xbf16>, vector<8x16xf32> -> vector<8x16xf32>
    %241 = arith.truncf %240 : vector<8x16xf32> to vector<8x16xbf16>
    %242 = vector.extract_strided_slice %186 {offsets = [16, 0], sizes = [16, 32], strides = [1, 1]} : vector<32x32xbf16> to vector<16x32xbf16>
    %cst_73 = arith.constant dense<0.000000e+00> : vector<8x32xf32>
    %243 = tpu.matmul %241, %242, %cst_73 {dimension_numbers = #tpu.dot_dimension_numbers<[1], [0], [0], [1], [0, 0, 1, 1], [], []>} : vector<8x16xbf16>, vector<16x32xbf16>, vector<8x32xf32> -> vector<8x32xf32>
    %244 = arith.addf %218, %243 : vector<8x32xf32>
    %245 = arith.addf %170, %244 : vector<8x32xf32>
    %246 = vector.broadcast %178 : vector<1x32xf32> to vector<8x32xf32>
    %247 = arith.addf %245, %246 : vector<8x32xf32>
    %cst_74 = arith.constant dense<0.000000e+00> : vector<8xf32>
    %248 = vector.multi_reduction <add>, %247, %cst_74 [1] : vector<8x32xf32> to vector<8xf32>
    %249 = vector.shape_cast %248 : vector<8xf32> to vector<8x1xf32>
    %cst_75 = arith.constant 3.200000e+01 : f32
    %250 = vector.broadcast %cst_75 : f32 to vector<8x1xf32>
    %251 = arith.divf %249, %250 : vector<8x1xf32>
    %252 = vector.broadcast %251 : vector<8x1xf32> to vector<8x32xf32>
    %253 = arith.subf %247, %252 : vector<8x32xf32>
    %254 = arith.mulf %253, %253 : vector<8x32xf32>
    %cst_76 = arith.constant dense<0.000000e+00> : vector<8xf32>
    %255 = vector.multi_reduction <add>, %254, %cst_76 [1] : vector<8x32xf32> to vector<8xf32>
    %256 = vector.shape_cast %255 : vector<8xf32> to vector<8x1xf32>
    %cst_77 = arith.constant 3.200000e+01 : f32
    %257 = vector.broadcast %cst_77 : f32 to vector<8x1xf32>
    %258 = arith.divf %256, %257 : vector<8x1xf32>
    %259 = vector.broadcast %251 : vector<8x1xf32> to vector<8x32xf32>
    %260 = arith.subf %247, %259 : vector<8x32xf32>
    %cst_78 = arith.constant 9.99999996E-13 : f32
    %261 = vector.broadcast %cst_78 : f32 to vector<8x1xf32>
    %262 = arith.addf %258, %261 : vector<8x1xf32>
    %263 = math.rsqrt %262 : vector<8x1xf32>
    %264 = vector.broadcast %263 : vector<8x1xf32> to vector<8x32xf32>
    %265 = arith.mulf %260, %264 : vector<8x32xf32>
    %266 = vector.broadcast %179 : vector<1x32xf32> to vector<8x32xf32>
    %267 = arith.mulf %265, %266 : vector<8x32xf32>
    %268 = vector.broadcast %180 : vector<1x32xf32> to vector<8x32xf32>
    %269 = arith.addf %267, %268 : vector<8x32xf32>
    %270 = arith.truncf %269 : vector<8x32xf32> to vector<8x32xbf16>
    %cst_79 = arith.constant dense<0.000000e+00> : vector<8x64xf32>
    %271 = tpu.matmul %270, %187, %cst_79 {dimension_numbers = #tpu.dot_dimension_numbers<[1], [0], [0], [1], [0, 0, 1, 1], [], []>} : vector<8x32xbf16>, vector<32x64xbf16>, vector<8x64xf32> -> vector<8x64xf32>
    %272 = vector.broadcast %181 : vector<1x64xf32> to vector<8x64xf32>
    %273 = arith.addf %271, %272 : vector<8x64xf32>
    %cst_80 = arith.constant 5.000000e-01 : f32
    %274 = vector.broadcast %cst_80 : f32 to vector<8x64xf32>
    %275 = arith.mulf %274, %273 : vector<8x64xf32>
    %cst_81 = arith.constant 4.471500e-02 : f32
    %276 = vector.broadcast %cst_81 : f32 to vector<8x64xf32>
    %277 = arith.mulf %276, %273 : vector<8x64xf32>
    %278 = arith.mulf %277, %273 : vector<8x64xf32>
    %279 = arith.mulf %278, %273 : vector<8x64xf32>
    %280 = arith.addf %273, %279 : vector<8x64xf32>
    %cst_82 = arith.constant 0.797884583 : f32
    %281 = vector.broadcast %cst_82 : f32 to vector<8x64xf32>
    %282 = arith.mulf %281, %280 : vector<8x64xf32>
    %283 = math.tanh %282 : vector<8x64xf32>
    %cst_83 = arith.constant 1.000000e+00 : f32
    %284 = vector.broadcast %cst_83 : f32 to vector<8x64xf32>
    %285 = arith.addf %284, %283 : vector<8x64xf32>
    %286 = arith.mulf %275, %285 : vector<8x64xf32>
    %287 = arith.truncf %286 : vector<8x64xf32> to vector<8x64xbf16>
    %cst_84 = arith.constant dense<0.000000e+00> : vector<8x32xf32>
    %288 = tpu.matmul %287, %176, %cst_84 {dimension_numbers = #tpu.dot_dimension_numbers<[1], [0], [0], [1], [0, 0, 1, 1], [], []>} : vector<8x64xbf16>, vector<64x32xbf16>, vector<8x32xf32> -> vector<8x32xf32>
    %289 = vector.broadcast %182 : vector<1x32xf32> to vector<8x32xf32>
    %290 = arith.addf %288, %289 : vector<8x32xf32>
    %291 = arith.addf %269, %290 : vector<8x32xf32>
    %cst_85 = arith.constant dense<0.000000e+00> : vector<8xf32>
    %292 = vector.multi_reduction <add>, %291, %cst_85 [1] : vector<8x32xf32> to vector<8xf32>
    %293 = vector.shape_cast %292 : vector<8xf32> to vector<8x1xf32>
    %cst_86 = arith.constant 3.200000e+01 : f32
    %294 = vector.broadcast %cst_86 : f32 to vector<8x1xf32>
    %295 = arith.divf %293, %294 : vector<8x1xf32>
    %296 = vector.broadcast %295 : vector<8x1xf32> to vector<8x32xf32>
    %297 = arith.subf %291, %296 : vector<8x32xf32>
    %298 = arith.mulf %297, %297 : vector<8x32xf32>
    %cst_87 = arith.constant dense<0.000000e+00> : vector<8xf32>
    %299 = vector.multi_reduction <add>, %298, %cst_87 [1] : vector<8x32xf32> to vector<8xf32>
    %300 = vector.shape_cast %299 : vector<8xf32> to vector<8x1xf32>
    %cst_88 = arith.constant 3.200000e+01 : f32
    %301 = vector.broadcast %cst_88 : f32 to vector<8x1xf32>
    %302 = arith.divf %300, %301 : vector<8x1xf32>
    %303 = vector.broadcast %295 : vector<8x1xf32> to vector<8x32xf32>
    %304 = arith.subf %291, %303 : vector<8x32xf32>
    %cst_89 = arith.constant 9.99999996E-13 : f32
    %305 = vector.broadcast %cst_89 : f32 to vector<8x1xf32>
    %306 = arith.addf %302, %305 : vector<8x1xf32>
    %307 = math.rsqrt %306 : vector<8x1xf32>
    %308 = vector.broadcast %307 : vector<8x1xf32> to vector<8x32xf32>
    %309 = arith.mulf %304, %308 : vector<8x32xf32>
    %310 = vector.broadcast %183 : vector<1x32xf32> to vector<8x32xf32>
    %311 = arith.mulf %309, %310 : vector<8x32xf32>
    %312 = vector.broadcast %184 : vector<1x32xf32> to vector<8x32xf32>
    %313 = arith.addf %311, %312 : vector<8x32xf32>
    %314 = vector.extract_strided_slice %313 {offsets = [0, 0], sizes = [1, 32], strides = [1, 1]} : vector<8x32xf32> to vector<1x32xf32>
    %c2 = arith.constant 2 : index
    %c0_90 = arith.constant 0 : index
    %315 = vector.load %arg3[%c2, %c0_90] : memref<8x128xf32, #tpu.memory_space<vmem>>, vector<1x32xf32>
    %c3 = arith.constant 3 : index
    %c0_91 = arith.constant 0 : index
    %316 = vector.load %arg3[%c3, %c0_91] : memref<8x128xf32, #tpu.memory_space<vmem>>, vector<1x1xf32>
    %317 = arith.mulf %314, %315 : vector<1x32xf32>
    %cst_92 = arith.constant dense<0.000000e+00> : vector<1xf32>
    %318 = vector.multi_reduction <add>, %317, %cst_92 [1] : vector<1x32xf32> to vector<1xf32>
    %319 = vector.shape_cast %318 : vector<1xf32> to vector<1x1xf32>
    %320 = arith.addf %319, %316 : vector<1x1xf32>
    %c0_93 = arith.constant 0 : index
    %c0_94 = arith.constant 0 : index
    %c0_95 = arith.constant 0 : index
    %321 = vector.load %arg7[%c0_93, %c0_94, %c0_95] : memref<1x1x1xf32, #tpu.memory_space<vmem>>, vector<1x1x1xf32>
    %322 = vector.shape_cast %321 : vector<1x1x1xf32> to vector<1x1xf32>
    %323 = vector.shape_cast %320 : vector<1x1xf32> to vector<1x1x1xf32>
    tpu.vector_store %arg7[%c0_93, %c0_94, %c0_95], %323 {strides = array<i32>} : memref<1x1x1xf32, #tpu.memory_space<vmem>>, vector<1x1x1xf32>,
    return
  }
  func.func @transform_0(%arg0: i32) -> (i32, i32, i32) {
    %c0_i32 = arith.constant 0 : i32
    %c0_i32_0 = arith.constant 0 : i32
    %c0_i32_1 = arith.constant 0 : i32
    return %arg0, %c0_i32, %c0_i32_0 : i32, i32, i32
  }
  func.func @transform_1(%arg0: i32) -> (i32, i32, i32) {
    %c0_i32 = arith.constant 0 : i32
    %c0_i32_0 = arith.constant 0 : i32
    %c0_i32_1 = arith.constant 0 : i32
    return %arg0, %c0_i32, %c0_i32_0 : i32, i32, i32
  }
  func.func @transform_2(%arg0: i32) -> (i32, i32) {
    %c0_i32 = arith.constant 0 : i32
    %c0_i32_0 = arith.constant 0 : i32
    %c0_i32_1 = arith.constant 0 : i32
    return %c0_i32, %c0_i32_0 : i32, i32
  }
  func.func @transform_3(%arg0: i32) -> (i32, i32, i32) {
    %c0_i32 = arith.constant 0 : i32
    %c0_i32_0 = arith.constant 0 : i32
    %c0_i32_1 = arith.constant 0 : i32
    %c0_i32_2 = arith.constant 0 : i32
    return %c0_i32, %c0_i32_0, %c0_i32_1 : i32, i32, i32
  }
  func.func @transform_4(%arg0: i32) -> (i32, i32, i32) {
    %c0_i32 = arith.constant 0 : i32
    %c0_i32_0 = arith.constant 0 : i32
    %c0_i32_1 = arith.constant 0 : i32
    %c0_i32_2 = arith.constant 0 : i32
    return %c0_i32, %c0_i32_0, %c0_i32_1 : i32, i32, i32
  }
  func.func @transform_5(%arg0: i32) -> (i32, i32, i32) {
    %c0_i32 = arith.constant 0 : i32
    %c0_i32_0 = arith.constant 0 : i32
    %c0_i32_1 = arith.constant 0 : i32
    %c0_i32_2 = arith.constant 0 : i32
    return %c0_i32, %c0_i32_0, %c0_i32_1 : i32, i32, i32
  }
  func.func @transform_6(%arg0: i32) -> (i32, i32, i32) {
    %c0_i32 = arith.constant 0 : i32
    %c0_i32_0 = arith.constant 0 : i32
    %c0_i32_1 = arith.constant 0 : i32
    return %arg0, %c0_i32, %c0_i32_0 : i32, i32, i32
  }
}

</mosaic_0001>

<llo_original>
// kernel: tpu_custom_call.1
$region0: #{tpu_custom_call.1}
  #allocation0 [shape = 'u32[]', space=smem, size = 0x4, offset = 0x4, fixed_abs, tag = 'smem constant byte address 0x4 - core index']
  #allocation1 [shape = 'u32[72,128]{1,0:T(1,128)}', space=vmem, size = 0x9000, scoped, tag = 'internal scratch']
  %s0 = inlined_call_operand.hbm [shape: f32[2,8,32], index: 0, kind: input, shape index: {}]
  %s1 = inlined_call_operand.hbm [shape: f32[2,8,8], index: 1, kind: input, shape index: {}]
  %s2 = inlined_call_operand.hbm [shape: f32[8,128], index: 2, kind: input, shape index: {}]
  %s3 = inlined_call_operand.hbm [shape: f32[2,8,128], index: 3, kind: input, shape index: {}]
  %s4 = inlined_call_operand.vmem [shape: bf16[2,32,384], index: 4, kind: input, shape index: {}]
  %s5 = inlined_call_operand.vmem [shape: bf16[2,64,32], index: 5, kind: input, shape index: {}]
  %s6 = inlined_call_operand.vmem [shape: f32[2,1,1], index: 6, kind: output, shape index: {}]
  %s7 = sld [smem:[#allocation0]]
  $region73: #{tpu_custom_call.1} parent=0
    _
  %s9 = ssub.s32 1, %s7
  %s10 = scalar_select 0, %s9, %s7
  $region1: #{tpu_custom_call.1} parent=0
    #allocation2 [shape = 'u8[8192]{0}', space=vmem, size = 0x2000, scoped, tag = 'input window, operand 0']
    #allocation3 [shape = 's32[2]{0}', space=sflag, size = 0x8, scoped, tag = 'scoped memory for tpu_custom_call.1']
    #allocation4 [shape = 'u8[8192]{0}', space=vmem, size = 0x2000, scoped, tag = 'input window, operand 1']
    #allocation5 [shape = 's32[2]{0}', space=sflag, size = 0x8, scoped, tag = 'scoped memory for tpu_custom_call.1']
    #allocation6 [shape = 'u8[4096]{0}', space=vmem, size = 0x1000, scoped, tag = 'input window, operand 2, single buffered']
    #allocation7 [shape = 'u8[8192]{0}', space=vmem, size = 0x2000, scoped, tag = 'input window, operand 3, single buffered']
    #allocation8 [shape = 's32[1]{0}', space=sflag, size = 0x4, scoped, tag = 'scoped memory for tpu_custom_call.1']
    %11 = vsyncpa [#allocation3], 0
    %s12 = scalar_lea.sflag [#allocation3], 1
    %13 = vsyncpa %s12, 0
    %14 = vsyncpa [#allocation5], 0
    %s15 = scalar_lea.sflag [#allocation5], 1
    %16 = vsyncpa %s15, 0
    %17 = vsyncpa [#allocation8], 0
    loop: start=0, step=1, limit=4
    $region2: #{tpu_custom_call.1} parent=1 // loop_pre_header
      _
    $region3: #{tpu_custom_call.1} parent=1 // loop_header
      %s19 = sphi 0, %s23
      %p20 = scmp.ge.s32.totalorder %s19, 4
      %s29 = sphi 0, %s31
      %s32 = sphi 0, %s29
      %s33 = sphi 0, %s32
      %s49 = sphi 0, %s33
      %s55 = sphi 0, %s57
      %s58 = sphi 0, %s55
      %s59 = sphi 0, %s58
      %s75 = sphi 0, %s59
      %s79 = sphi 0, %s79
      %s81 = sphi 0, %s79
      %s82 = sphi 0, %s81
      %s96 = sphi 0, %s82
      %s100 = sphi 0, %s100
      %s102 = sphi 0, %s100
      %s103 = sphi 0, %s102
      %s117 = sphi 0, %s103
      %s121 = sphi 0, %s121
      %s123 = sphi 0, %s121
      %s124 = sphi 0, %s123
      %s138 = sphi 0, %s124
      %s142 = sphi 0, %s142
      %s144 = sphi 0, %s142
      %s145 = sphi 0, %s144
      %s159 = sphi 0, %s145
      %s165 = sphi 0, %s167
      %s168 = sphi 0, %s165
      %s169 = sphi 0, %s168
      %s185 = sphi 0, %s169
    $region4: #{tpu_custom_call.1} parent=1 // loop_header_branch
      %22 = sbr.rel (%p20) target = $region8
    $region5: #{tpu_custom_call.1} parent=1 // loop_body
      %s24 = ssub.s32 %s19, 1
      %s25 = ssub.s32 %s19, 2
      %s26 = sadd.s32 %s19, 1
      %s27 = ssub.s32 %s19, %s26
      %p28 = scmp.eq.s32.totalorder %s27, 0
      %s30 = sadd.s32 %s29, 1
      %s31 = scalar_select %p28, %s29, %s30
      %p34 = pneg %p28
      %p35 = scmp.eq.s32.totalorder %s19, 1
      %p36 = por %p34, %p35
      %p37 = scmp.ne.s32.totalorder %s29, %s32
      %p38 = scmp.eq.s32.totalorder %s19, 0
      %p39 = por %p37, %p38
      %p40 = scmp.ne.s32.totalorder %s29, %s32
      %p41 = scmp.eq.s32.totalorder %s24, 1
      %p42 = por %p40, %p41
      %p43 = scmp.ne.s32.totalorder %s32, %s33
      %p44 = scmp.eq.s32.totalorder %s24, 0
      %p45 = por %p43, %p44
      %p46 = scmp.ne.s32.totalorder %s32, %s33
      %p47 = scmp.eq.s32.totalorder %s25, 1
      %p48 = por %p46, %p47
      %p50 = scmp.ne.s32.totalorder %s33, %s49
      %p51 = scmp.eq.s32.totalorder %s25, 0
      %p52 = por %p50, %p51
      %s53 = ssub.s32 %s19, %s26
      %p54 = scmp.eq.s32.totalorder %s53, 0
      %s56 = sadd.s32 %s55, 1
      %s57 = scalar_select %p54, %s55, %s56
      %p60 = pneg %p54
      %p61 = scmp.eq.s32.totalorder %s19, 1
      %p62 = por %p60, %p61
      %p63 = scmp.ne.s32.totalorder %s55, %s58
      %p64 = scmp.eq.s32.totalorder %s19, 0
      %p65 = por %p63, %p64
      %p66 = scmp.ne.s32.totalorder %s55, %s58
      %p67 = scmp.eq.s32.totalorder %s24, 1
      %p68 = por %p66, %p67
      %p69 = scmp.ne.s32.totalorder %s58, %s59
      %p70 = scmp.eq.s32.totalorder %s24, 0
      %p71 = por %p69, %p70
      %p72 = scmp.ne.s32.totalorder %s58, %s59
      %p73 = scmp.eq.s32.totalorder %s25, 1
      %p74 = por %p72, %p73
      %p76 = scmp.ne.s32.totalorder %s59, %s75
      %p77 = scmp.eq.s32.totalorder %s25, 0
      %p78 = por %p76, %p77
      %s80 = sadd.s32 %s79, 1
      %p83 = scmp.eq.s32.totalorder %s19, 1
      %p84 = scmp.ne.s32.totalorder %s79, %s81
      %p85 = scmp.eq.s32.totalorder %s19, 0
      %p86 = por %p84, %p85
      %p87 = scmp.ne.s32.totalorder %s79, %s81
      %p88 = scmp.eq.s32.totalorder %s24, 1
      %p89 = por %p87, %p88
      %p90 = scmp.ne.s32.totalorder %s81, %s82
      %p91 = scmp.eq.s32.totalorder %s24, 0
      %p92 = por %p90, %p91
      %p93 = scmp.ne.s32.totalorder %s81, %s82
      %p94 = scmp.eq.s32.totalorder %s25, 1
      %p95 = por %p93, %p94
      %p97 = scmp.ne.s32.totalorder %s82, %s96
      %p98 = scmp.eq.s32.totalorder %s25, 0
      %p99 = por %p97, %p98
      %s101 = sadd.s32 %s100, 1
      %p104 = scmp.eq.s32.totalorder %s19, 1
      %p105 = scmp.ne.s32.totalorder %s100, %s102
      %p106 = scmp.eq.s32.totalorder %s19, 0
      %p107 = por %p105, %p106
      %p108 = scmp.ne.s32.totalorder %s100, %s102
      %p109 = scmp.eq.s32.totalorder %s24, 1
      %p110 = por %p108, %p109
      %p111 = scmp.ne.s32.totalorder %s102, %s103
      %p112 = scmp.eq.s32.totalorder %s24, 0
      %p113 = por %p111, %p112
      %p114 = scmp.ne.s32.totalorder %s102, %s103
      %p115 = scmp.eq.s32.totalorder %s25, 1
      %p116 = por %p114, %p115
      %p118 = scmp.ne.s32.totalorder %s103, %s117
      %p119 = scmp.eq.s32.totalorder %s25, 0
      %p120 = por %p118, %p119
      %s122 = sadd.s32 %s121, 1
      %p125 = scmp.eq.s32.totalorder %s19, 1
      %p126 = scmp.ne.s32.totalorder %s121, %s123
      %p127 = scmp.eq.s32.totalorder %s19, 0
      %p128 = por %p126, %p127
      %p129 = scmp.ne.s32.totalorder %s121, %s123
      %p130 = scmp.eq.s32.totalorder %s24, 1
      %p131 = por %p129, %p130
      %p132 = scmp.ne.s32.totalorder %s123, %s124
      %p133 = scmp.eq.s32.totalorder %s24, 0
      %p134 = por %p132, %p133
      %p135 = scmp.ne.s32.totalorder %s123, %s124
      %p136 = scmp.eq.s32.totalorder %s25, 1
      %p137 = por %p135, %p136
      %p139 = scmp.ne.s32.totalorder %s124, %s138
      %p140 = scmp.eq.s32.totalorder %s25, 0
      %p141 = por %p139, %p140
      %s143 = sadd.s32 %s142, 1
      %p146 = scmp.eq.s32.totalorder %s19, 1
      %p147 = scmp.ne.s32.totalorder %s142, %s144
      %p148 = scmp.eq.s32.totalorder %s19, 0
      %p149 = por %p147, %p148
      %p150 = scmp.ne.s32.totalorder %s142, %s144
      %p151 = scmp.eq.s32.totalorder %s24, 1
      %p152 = por %p150, %p151
      %p153 = scmp.ne.s32.totalorder %s144, %s145
      %p154 = scmp.eq.s32.totalorder %s24, 0
      %p155 = por %p153, %p154
      %p156 = scmp.ne.s32.totalorder %s144, %s145
      %p157 = scmp.eq.s32.totalorder %s25, 1
      %p158 = por %p156, %p157
      %p160 = scmp.ne.s32.totalorder %s145, %s159
      %p161 = scmp.eq.s32.totalorder %s25, 0
      %p162 = por %p160, %p161
      %s163 = ssub.s32 %s19, %s26
      %p164 = scmp.eq.s32.totalorder %s163, 0
      %s166 = sadd.s32 %s165, 1
      %s167 = scalar_select %p164, %s165, %s166
      %p170 = pneg %p164
      %p171 = scmp.eq.s32.totalorder %s19, 1
      %p172 = por %p170, %p171
      %p173 = scmp.ne.s32.totalorder %s165, %s168
      %p174 = scmp.eq.s32.totalorder %s19, 0
      %p175 = por %p173, %p174
      %p176 = scmp.ne.s32.totalorder %s165, %s168
      %p177 = scmp.eq.s32.totalorder %s24, 1
      %p178 = por %p176, %p177
      %p179 = scmp.ne.s32.totalorder %s168, %s169
      %p180 = scmp.eq.s32.totalorder %s24, 0
      %p181 = por %p179, %p180
      %p182 = scmp.ne.s32.totalorder %s168, %s169
      %p183 = scmp.eq.s32.totalorder %s25, 1
      %p184 = por %p182, %p183
      %p186 = scmp.ne.s32.totalorder %s169, %s185
      %p187 = scmp.eq.s32.totalorder %s25, 0
      %p188 = por %p186, %p187
      %p189 = scmp.le.s32.totalorder 1, %s19
      %p190 = scmp.lt.s32.totalorder %s19, 3
      %p191 = pnand %p189, %p190
      %p192 = pneg %p191
      // Predicated region
      $region9: #{tpu_custom_call.1} parent=5 // pred_check
        _
      $region10: #{tpu_custom_call.1} parent=5 // pred_check_branch
        %194 = sbr.rel (%p191) target = $region12
      $region11: #{tpu_custom_call.1} parent=5 // pred_region
        %s195 = ssub.s32 %s19, 1
        // Predicated region
        $region13: #{tpu_custom_call.1} parent=11 // pred_check
          %p196 = pneg %p92
        $region14: #{tpu_custom_call.1} parent=11 // pred_check_branch
          %198 = sbr.rel (%p196) target = $region16
        $region15: #{tpu_custom_call.1} parent=11 // pred_region
          %200 = vsyncadd [#allocation5], 0
          %s202 = sshll.u32 %s2, 4
          %s203 = int_to_ptr.hbm [resolvable:$true] %s202
          %s204 = sshll.u32 [#allocation6], 4
          %s205 = int_to_ptr.vmem [resolvable:$true] %s204
          %207 = dma.hbm_to_vmem [thread:$0]  %s203, 128, %s205, [#allocation5]
        $region16: #{tpu_custom_call.1} parent=11 // pred_fallthru
          _
        // Predicated region
        $region17: #{tpu_custom_call.1} parent=11 // pred_check
          %p208 = pneg %p113
        $region18: #{tpu_custom_call.1} parent=11 // pred_check_branch
          %210 = sbr.rel (%p208) target = $region20
        $region19: #{tpu_custom_call.1} parent=11 // pred_region
          %212 = vsyncadd [#allocation8], 0
          %s213 = sshll.u32 %s3, 4
          %s214 = int_to_ptr.hbm [resolvable:$true] %s213
          %s215 = sshll.u32 [#allocation7], 4
          %s216 = int_to_ptr.vmem [resolvable:$true] %s215
          %221 = dma.hbm_to_vmem [thread:$0]  %s214, 256, %s216, [#allocation8], 128, 128, 8
        $region20: #{tpu_custom_call.1} parent=11 // pred_fallthru
          _
        // Predicated region
        $region21: #{tpu_custom_call.1} parent=11 // pred_check
          %p222 = pneg %p134
        $region22: #{tpu_custom_call.1} parent=11 // pred_check_branch
          %224 = sbr.rel (%p222) target = $region24
        $region23: #{tpu_custom_call.1} parent=11 // pred_region
          _
        $region24: #{tpu_custom_call.1} parent=11 // pred_fallthru
          _
        // Predicated region
        $region25: #{tpu_custom_call.1} parent=11 // pred_check
          %p225 = pneg %p155
        $region26: #{tpu_custom_call.1} parent=11 // pred_check_branch
          %227 = sbr.rel (%p225) target = $region28
        $region27: #{tpu_custom_call.1} parent=11 // pred_region
          _
        $region28: #{tpu_custom_call.1} parent=11 // pred_fallthru
          _
      $region12: #{tpu_custom_call.1} parent=5 // pred_fallthru
        _
      %p228 = scmp.lt.s32.totalorder %s19, 2
      // Predicated region
      $region29: #{tpu_custom_call.1} parent=5 // pred_check
        %p229 = pneg %p228
      $region30: #{tpu_custom_call.1} parent=5 // pred_check_branch
        %231 = sbr.rel (%p229) target = $region32
      $region31: #{tpu_custom_call.1} parent=5 // pred_region
        // Predicated region
        $region33: #{tpu_custom_call.1} parent=31 // pred_check
          %p232 = pneg %p39
        $region34: #{tpu_custom_call.1} parent=31 // pred_check_branch
          %234 = sbr.rel (%p232) target = $region36
        $region35: #{tpu_custom_call.1} parent=31 // pred_region
          %s235 = sand.u32 %s29, 1
          %s236 = scalar_lea.sflag [#allocation3], %s235
          %s237 = sand.u32 %s29, 1
          %s238 = smul.addr %s237, 8
          %s239 = scalar_lea.vmem [#allocation2], %s238
          %241 = vsyncadd %s236, 0
          %s242 = smul.addr %s19, 8
          %s243 = scalar_lea.hbm %s0, %s242
          %s245 = sshll.u32 %s243, 4
          %s246 = int_to_ptr.hbm [resolvable:$true] %s245
          %s247 = sshll.u32 %s239, 4
          %s248 = int_to_ptr.vmem [resolvable:$true] %s247
          %250 = dma.hbm_to_vmem [thread:$0]  %s246, 128, %s248, %s236
        $region36: #{tpu_custom_call.1} parent=31 // pred_fallthru
          _
        // Predicated region
        $region37: #{tpu_custom_call.1} parent=31 // pred_check
          %p251 = pneg %p65
        $region38: #{tpu_custom_call.1} parent=31 // pred_check_branch
          %253 = sbr.rel (%p251) target = $region40
        $region39: #{tpu_custom_call.1} parent=31 // pred_region
          %s254 = sand.u32 %s19, 1
          %s255 = scalar_lea.sflag [#allocation5], %s254
          %s256 = sand.u32 %s55, 1
          %s257 = smul.addr %s256, 8
          %s258 = scalar_lea.vmem [#allocation4], %s257
          %260 = vsyncadd %s255, 0
          %s261 = smul.addr %s19, 8
          %s262 = scalar_lea.hbm %s1, %s261
          %s264 = sshll.u32 %s262, 4
          %s265 = int_to_ptr.hbm [resolvable:$true] %s264
          %s266 = sshll.u32 %s258, 4
          %s267 = int_to_ptr.vmem [resolvable:$true] %s266
          %269 = dma.hbm_to_vmem [thread:$0]  %s265, 128, %s267, %s255
        $region40: #{tpu_custom_call.1} parent=31 // pred_fallthru
          _
      $region32: #{tpu_custom_call.1} parent=5 // pred_fallthru
        _
      %p270 = scmp.le.s32.totalorder 1, %s19
      %p271 = scmp.lt.s32.totalorder %s19, 3
      %p272 = pnand %p270, %p271
      %p273 = pneg %p272
      // Predicated region
      $region41: #{tpu_custom_call.1} parent=5 // pred_check
        _
      $region42: #{tpu_custom_call.1} parent=5 // pred_check_branch
        %275 = sbr.rel (%p272) target = $region44
      $region43: #{tpu_custom_call.1} parent=5 // pred_region
        %s276 = ssub.s32 %s19, 1
        %s277 = sand.u32 %s32, 1
        %s278 = scalar_lea.sflag [#allocation3], %s277
        %s279 = sand.u32 %s32, 1
        %s280 = smul.addr %s279, 8
        %s281 = scalar_lea.vmem [#allocation2], %s280
        // Predicated region
        $region45: #{tpu_custom_call.1} parent=43 // pred_check
          %p282 = pneg %p45
        $region46: #{tpu_custom_call.1} parent=43 // pred_check_branch
          %284 = sbr.rel (%p282) target = $region48
        $region47: #{tpu_custom_call.1} parent=43 // pred_region
          %286 = dma.done %s278, 128
        $region48: #{tpu_custom_call.1} parent=43 // pred_fallthru
          _
        %s287 = sand.u32 %s24, 1
        %s288 = scalar_lea.sflag [#allocation5], %s287
        %s289 = sand.u32 %s58, 1
        %s290 = smul.addr %s289, 8
        %s291 = scalar_lea.vmem [#allocation4], %s290
        // Predicated region
        $region49: #{tpu_custom_call.1} parent=43 // pred_check
          %p292 = pneg %p71
        $region50: #{tpu_custom_call.1} parent=43 // pred_check_branch
          %294 = sbr.rel (%p292) target = $region52
        $region51: #{tpu_custom_call.1} parent=43 // pred_region
          %296 = dma.done %s288, 128
        $region52: #{tpu_custom_call.1} parent=43 // pred_fallthru
          _
        // Predicated region
        $region53: #{tpu_custom_call.1} parent=43 // pred_check
          %p297 = pneg %p92
        $region54: #{tpu_custom_call.1} parent=43 // pred_check_branch
          %299 = sbr.rel (%p297) target = $region56
        $region55: #{tpu_custom_call.1} parent=43 // pred_region
          %301 = dma.done [#allocation5], 128
        $region56: #{tpu_custom_call.1} parent=43 // pred_fallthru
          _
        // Predicated region
        $region57: #{tpu_custom_call.1} parent=43 // pred_check
          %p302 = pneg %p113
        $region58: #{tpu_custom_call.1} parent=43 // pred_check_branch
          %304 = sbr.rel (%p302) target = $region60
        $region59: #{tpu_custom_call.1} parent=43 // pred_region
          %306 = dma.done [#allocation8], 256
        $region60: #{tpu_custom_call.1} parent=43 // pred_fallthru
          _
        %s307 = sand.u32 %s32, 1
        %s308 = scalar_lea.sflag [#allocation3], %s307
        %s309 = sand.u32 %s32, 1
        %s310 = smul.addr %s309, 8
        %s311 = scalar_lea.vmem [#allocation2], %s310
        %p312 = pneg %p45
        %p313 = pneg %p42
        %s314 = sand.u32 %s24, 1
        %s315 = scalar_lea.sflag [#allocation5], %s314
        %s316 = sand.u32 %s58, 1
        %s317 = smul.addr %s316, 8
        %s318 = scalar_lea.vmem [#allocation4], %s317
        %p319 = pneg %p71
        %p320 = pneg %p68
        %p321 = pneg %p92
        %p322 = pneg %p89
        %p323 = pneg %p113
        %p324 = pneg %p110
        %p325 = pneg %p134
        %p326 = pneg %p131
        %p327 = pneg %p155
        %p328 = pneg %p152
        %p329 = pneg %p181
        %p330 = pneg %p178
        %p331 = scmp.lt.s32.totalorder %s24, 1
        %s332 = scalar_select %p331, %s24, 1
        %s333 = scalar_lea.vmem %s6, %s332
        %p334 = scmp.lt.s32.totalorder %s24, 1
        %s335 = scalar_select %p334, %s24, 1
        %s336 = scalar_lea.vmem %s6, %s335
        %v338 = vld [vmem:[#allocation6] sm:$0x1]
        %v339 = vld [vmem:[#allocation6 + $0x1] sm:$0x1]
        %v340 = vld [vmem:[%s281] sm:$0xff]
        %vm341 = vcmask 261120
        %v342 = vsel %vm341, %v340, 0.0
        %343 = vadd.xlane.f32.xlu0 %v342
        %v344 = vpop.xlane.xlu0 %343
        %v345 = vrcp.pop 32.0
        %v346 = vmul.f32 32.0, %v345
        %v347 = vsub.f32 1.0, %v346
        %v348 = vmul.f32 %v345, %v347
        %v349 = vadd.f32 %v345, %v348
        %vm350 = vweird.f32 %v345
        %v351 = vsel %vm350, %v345, %v349
        %v352 = vmul.f32 %v344, %v351
        %v353 = vsub.f32 %v340, %v352
        %v354 = vmul.f32 %v353, %v353
        %v355 = vsel %vm341, %v354, 0.0
        %356 = vadd.xlane.f32.xlu0 %v355
        %v357 = vpop.xlane.xlu0 %356
        %v358 = vmul.f32 %v357, %v351
        %v359 = vadd.f32 %v358, 1e-12
        %v360 = vrsqrt.pop %v359
        %v361 = vmul.f32 %v360, %v359
        %v362 = vmul.f32 %v361, %v360
        %v363 = vmul.f32 0.5, %v362
        %v364 = vsub.f32 1.5, %v363
        %v365 = vmul.f32 %v360, %v364
        %vm366 = vweird.f32 %v359
        %vm367 = vweird.f32 %v360
        %vm368 = vmor %vm366, %vm367
        %v369 = vsel %vm368, %v360, %v365
        %v370 = vmul.f32 %v353, %v369
        %v371 = vperm.slane %v338, 0
        %v372 = vmul.f32 %v370, %v371
        %v373 = vperm.slane %v339, 0
        %v374 = vadd.f32 %v372, %v373
        %v375 = vld [vmem:[%s291] sm:$0xff]
        %v376 = vld [vmem:[#allocation7] sm:$0xff]
        %v377 = vld [vmem:[%s4] sm:$0xff]
        %v378 = vld [vmem:[%s4 + $0x8] sm:$0xf]
        %v379 = vld [vmem:[%s4 + $0xc] sm:$0xff]
        %v380 = vld [vmem:[%s4 + $0x14] sm:$0xf]
        %v381 = vld [vmem:[%s4 + $0x18] sm:$0xff]
        %v382 = vld [vmem:[%s4 + $0x20] sm:$0xf]
        %v383 = vld [vmem:[%s4 + $0x24] sm:$0xff]
        %v384 = vld [vmem:[%s4 + $0x2c] sm:$0xf]
        %v385 = vld [vmem:[%s5] sm:$0xf]
        %v386 = vld [vmem:[%s5 + $0x4] sm:$0xf]
        %v387 = vld [vmem:[%s5 + $0x8] sm:$0xf]
        %v388 = vld [vmem:[%s5 + $0xc] sm:$0xf]
        %v389 = vld [vmem:[%s5 + $0x10] sm:$0xf]
        %v390 = vld [vmem:[%s5 + $0x14] sm:$0xf]
        %v391 = vld [vmem:[%s5 + $0x18] sm:$0xf]
        %v392 = vld [vmem:[%s5 + $0x1c] sm:$0xf]
        %v393 = vpack.c.bf16 %v374, %v374
        %v394 = vperm.slane %v376, 0
        %v399 = vunpack.c.l.b16 %v377
        %v400 = vunpack.c.l.b16 %v379
        %v401 = vunpack.c.l.b16 %v381
        %v402 = vunpack.c.l.b16 %v383
        %v403 = vpack.c.b16 %v400, %v399
        %v404 = vpack.c.b16 %v402, %v401
        %v408 = vsel %vm341, %v393, 0
        %410 = vmatpush.bf16.msra.mxu0 0
        %411 = vmatpush.bf16.msra.mxu0 0
        %412 = vmatpush.bf16.msra.mxu0 0
        %413 = vmatpush.bf16.msra.mxu0 0
        %414 = vmatpush.bf16.msra.mxu0 0
        %415 = vmatpush.bf16.msra.mxu0 0
        %416 = vmatpush.bf16.msra.mxu0 %v404
        %417 = vmatpush.bf16.msra.mxu0 %v403
        %418 = vmatmul.bf16.gmra.mxu0 %v408
        %v419 = vpop.f32.mrf.mxu0
        %v420 = vadd.f32 %v394, %v419
        %v421 = vpop.f32.mrf.mxu0
        %422 = vdwg.mxu0
        %v423 = vpack.c.bf16 %v420, %v420
        %425 = vrot.lane.b32.xlu0 %v423, 96
        %v426 = vpop.permute.xlu0 %425
        %vm427 = vcmask 130048
        %v429 = vsel %vm427, %v423, 0
        %v432 = vsel %vm427, %v426, 0
        %434 = vmatpush.bf16.xpose.msra.mxu0 0
        %435 = vmatpush.bf16.xpose.msra.mxu0 0
        %436 = vmatpush.bf16.xpose.msra.mxu0 0
        %437 = vmatpush.bf16.xpose.msra.mxu0 0
        %438 = vmatpush.bf16.xpose.msra.mxu0 0
        %439 = vmatpush.bf16.xpose.msra.mxu0 0
        %440 = vmatpush.bf16.xpose.msra.mxu0 0
        %441 = vmatpush.bf16.xpose.msra.mxu0 %v432
        %442 = vmatmul.bf16.gmra.mxu0 %v429
        %v443 = vpop.f32.mrf.mxu0
        %v444 = vadd.f32 0.0, %v443
        %v445 = vpop.f32.mrf.mxu0
        %446 = vdwg.mxu0
        %v447 = vmul.f32 %v444, 0.25
        %v448 = vadd.f32 %v447, %v375
        %vm449 = vcmask 64512
        %v450 = vsel %vm449, %v448, -inf
        %451 = vmax.xlane.f32.xlu0 %v450
        %v452 = vpop.xlane.xlu0 %451
        %v453 = vsub.f32 %v448, %v452
        %v454 = vmul.f32 %v453, 1.442695
        %v455 = vpow.pop %v454
        %v456 = vsel %vm449, %v455, 0.0
        %457 = vadd.xlane.f32.xlu0 %v456
        %v458 = vpop.xlane.xlu0 %457
        %v459 = vrcp.pop %v458
        %v460 = vmul.f32 %v455, %v459
        %v461 = vpack.c.bf16 %v460, %v460
        %462 = vrot.lane.b32.xlu0 %v423, 64
        %v463 = vpop.permute.xlu0 %462
        %v465 = vsel %vm449, %v461, 0
        %vm467 = vcmask 1043456
        %v469 = vsel %vm467, %v463, 0
        %471 = vmatpush.bf16.msra.mxu0 0
        %472 = vmatpush.bf16.msra.mxu0 0
        %473 = vmatpush.bf16.msra.mxu0 0
        %474 = vmatpush.bf16.msra.mxu0 0
        %475 = vmatpush.bf16.msra.mxu0 0
        %476 = vmatpush.bf16.msra.mxu0 0
        %477 = vmatpush.bf16.msra.mxu0 0
        %478 = vmatpush.bf16.msra.mxu0 %v469
        %479 = vmatmul.bf16.gmra.mxu0 %v465
        %v480 = vpop.f32.mrf.mxu0
        %v481 = vadd.f32 0.0, %v480
        %v482 = vpop.f32.mrf.mxu0
        %483 = vdwg.mxu0
        %v484 = vpack.c.bf16 %v481, %v481
        %485 = vrot.lane.b32.xlu0 %v423, 112
        %v486 = vpop.permute.xlu0 %485
        %487 = vrot.lane.b32.xlu0 %v423, 80
        %v488 = vpop.permute.xlu0 %487
        %v490 = vsel %vm427, %v486, 0
        %v493 = vsel %vm427, %v488, 0
        %495 = vmatpush.bf16.xpose.msra.mxu0 0
        %496 = vmatpush.bf16.xpose.msra.mxu0 0
        %497 = vmatpush.bf16.xpose.msra.mxu0 0
        %498 = vmatpush.bf16.xpose.msra.mxu0 0
        %499 = vmatpush.bf16.xpose.msra.mxu0 0
        %500 = vmatpush.bf16.xpose.msra.mxu0 0
        %501 = vmatpush.bf16.xpose.msra.mxu0 0
        %502 = vmatpush.bf16.xpose.msra.mxu0 %v493
        %503 = vmatmul.bf16.gmra.mxu0 %v490
        %v504 = vpop.f32.mrf.mxu0
        %v505 = vadd.f32 0.0, %v504
        %v506 = vpop.f32.mrf.mxu0
        %507 = vdwg.mxu0
        %v508 = vmul.f32 %v505, 0.25
        %v509 = vadd.f32 %v508, %v375
        %v510 = vsel %vm449, %v509, -inf
        %511 = vmax.xlane.f32.xlu0 %v510
        %v512 = vpop.xlane.xlu0 %511
        %v513 = vsub.f32 %v509, %v512
        %v514 = vmul.f32 %v513, 1.442695
        %v515 = vpow.pop %v514
        %v516 = vsel %vm449, %v515, 0.0
        %517 = vadd.xlane.f32.xlu0 %v516
        %v518 = vpop.xlane.xlu0 %517
        %v519 = vrcp.pop %v518
        %v520 = vmul.f32 %v515, %v519
        %v521 = vpack.c.bf16 %v520, %v520
        %522 = vrot.lane.b32.xlu0 %v423, 48
        %v523 = vpop.permute.xlu0 %522
        %v525 = vsel %vm449, %v521, 0
        %v528 = vsel %vm467, %v523, 0
        %530 = vmatpush.bf16.msra.mxu0 0
        %531 = vmatpush.bf16.msra.mxu0 0
        %532 = vmatpush.bf16.msra.mxu0 0
        %533 = vmatpush.bf16.msra.mxu0 0
        %534 = vmatpush.bf16.msra.mxu0 0
        %535 = vmatpush.bf16.msra.mxu0 0
        %536 = vmatpush.bf16.msra.mxu0 0
        %537 = vmatpush.bf16.msra.mxu0 %v528
        %538 = vmatmul.bf16.gmra.mxu0 %v525
        %v539 = vpop.f32.mrf.mxu0
        %v540 = vadd.f32 0.0, %v539
        %v541 = vpop.f32.mrf.mxu0
        %542 = vdwg.mxu0
        %v543 = vpack.c.bf16 %v540, %v540
        %v544 = vunpack.c.h.b16 %v381
        %v545 = vunpack.c.h.b16 %v383
        %v546 = vpack.c.b16 %v545, %v544
        %v549 = vsel %vm427, %v543, 0
        %551 = vmatpush.bf16.msra.mxu0 0
        %552 = vmatpush.bf16.msra.mxu0 0
        %553 = vmatpush.bf16.msra.mxu0 0
        %554 = vmatpush.bf16.msra.mxu0 0
        %555 = vmatpush.bf16.msra.mxu0 0
        %556 = vmatpush.bf16.msra.mxu0 0
        %557 = vmatpush.bf16.msra.mxu0 0
        %558 = vmatpush.bf16.msra.mxu0 %v546
        %559 = vmatmul.bf16.gmra.mxu0 %v549
        %v560 = vpop.f32.mrf.mxu0
        %v561 = vadd.f32 0.0, %v560
        %v562 = vpop.f32.mrf.mxu0
        %563 = vdwg.mxu0
        %v564 = vunpack.c.h.b16 %v377
        %v565 = vunpack.c.h.b16 %v379
        %v566 = vpack.c.b16 %v565, %v564
        %v569 = vsel %vm427, %v484, 0
        %571 = vmatpush.bf16.msra.mxu0 0
        %572 = vmatpush.bf16.msra.mxu0 0
        %573 = vmatpush.bf16.msra.mxu0 0
        %574 = vmatpush.bf16.msra.mxu0 0
        %575 = vmatpush.bf16.msra.mxu0 0
        %576 = vmatpush.bf16.msra.mxu0 0
        %577 = vmatpush.bf16.msra.mxu0 0
        %578 = vmatpush.bf16.msra.mxu0 %v566
        %579 = vmatmul.bf16.gmra.mxu0 %v569
        %v580 = vpop.f32.mrf.mxu0
        %v581 = vadd.f32 %v561, %v580
        %v582 = vpop.f32.mrf.mxu0
        %583 = vdwg.mxu0
        %v584 = vadd.f32 %v374, %v581
        %v585 = vperm.slane %v376, 1
        %v586 = vadd.f32 %v584, %v585
        %v587 = vsel %vm341, %v586, 0.0
        %588 = vadd.xlane.f32.xlu0 %v587
        %v589 = vpop.xlane.xlu0 %588
        %v590 = vmul.f32 %v589, %v351
        %v591 = vsub.f32 %v586, %v590
        %v592 = vmul.f32 %v591, %v591
        %v593 = vsel %vm341, %v592, 0.0
        %594 = vadd.xlane.f32.xlu0 %v593
        %v595 = vpop.xlane.xlu0 %594
        %v596 = vmul.f32 %v595, %v351
        %v597 = vadd.f32 %v596, 1e-12
        %v598 = vrsqrt.pop %v597
        %v599 = vmul.f32 %v598, %v597
        %v600 = vmul.f32 %v599, %v598
        %v601 = vmul.f32 0.5, %v600
        %v602 = vsub.f32 1.5, %v601
        %v603 = vmul.f32 %v598, %v602
        %vm604 = vweird.f32 %v597
        %vm605 = vweird.f32 %v598
        %vm606 = vmor %vm604, %vm605
        %v607 = vsel %vm606, %v598, %v603
        %v608 = vmul.f32 %v591, %v607
        %v609 = vperm.slane %v376, 2
        %v610 = vmul.f32 %v608, %v609
        %v611 = vperm.slane %v376, 3
        %v612 = vadd.f32 %v610, %v611
        %v613 = vpack.c.bf16 %v612, %v612
        %v614 = vperm.slane %v376, 4
        %v619 = vunpack.c.l.b16 %v378
        %v620 = vunpack.c.l.b16 %v380
        %v621 = vunpack.c.l.b16 %v382
        %v622 = vunpack.c.l.b16 %v384
        %v623 = vpack.c.b16 %v620, %v619
        %v624 = vpack.c.b16 %v622, %v621
        %v628 = vsel %vm341, %v613, 0
        %630 = vmatpush.bf16.msra.mxu0 0
        %631 = vmatpush.bf16.msra.mxu0 0
        %632 = vmatpush.bf16.msra.mxu0 0
        %633 = vmatpush.bf16.msra.mxu0 0
        %634 = vmatpush.bf16.msra.mxu0 0
        %635 = vmatpush.bf16.msra.mxu0 0
        %636 = vmatpush.bf16.msra.mxu0 %v624
        %637 = vmatpush.bf16.msra.mxu0 %v623
        %638 = vmatmul.bf16.gmra.mxu0 %v628
        %v639 = vpop.f32.mrf.mxu0
        %v640 = vadd.f32 %v614, %v639
        %v641 = vpop.f32.mrf.mxu0
        %642 = vdwg.mxu0
        %v643 = vmul.f32 %v640, 0.5
        %v644 = vmul.f32 %v640, 0.044715
        %v645 = vmul.f32 %v644, %v640
        %v646 = vmul.f32 %v645, %v640
        %v647 = vadd.f32 %v640, %v646
        %v648 = vmul.f32 %v647, 0.7978846
        %v649 = vtanh.pop %v648
        %v650 = vadd.f32 %v649, 1.0
        %v651 = vmul.f32 %v643, %v650
        %v652 = vpack.c.bf16 %v651, %v651
        %v653 = vperm.slane %v376, 5
        %v662 = vunpack.c.l.b16 %v385
        %v663 = vunpack.c.l.b16 %v386
        %v664 = vunpack.c.l.b16 %v387
        %v665 = vunpack.c.l.b16 %v388
        %v666 = vunpack.c.l.b16 %v389
        %v667 = vunpack.c.l.b16 %v390
        %v668 = vunpack.c.l.b16 %v391
        %v669 = vunpack.c.l.b16 %v392
        %v670 = vpack.c.b16 %v663, %v662
        %v671 = vpack.c.b16 %v665, %v664
        %v672 = vpack.c.b16 %v667, %v666
        %v673 = vpack.c.b16 %v669, %v668
        %vm678 = vcmask 523264
        %v680 = vsel %vm678, %v652, 0
        %682 = vmatpush.bf16.msra.mxu0 0
        %683 = vmatpush.bf16.msra.mxu0 0
        %684 = vmatpush.bf16.msra.mxu0 0
        %685 = vmatpush.bf16.msra.mxu0 0
        %686 = vmatpush.bf16.msra.mxu0 %v673
        %687 = vmatpush.bf16.msra.mxu0 %v672
        %688 = vmatpush.bf16.msra.mxu0 %v671
        %689 = vmatpush.bf16.msra.mxu0 %v670
        %690 = vmatmul.bf16.gmra.mxu0 %v680
        %v691 = vpop.f32.mrf.mxu0
        %v692 = vadd.f32 %v653, %v691
        %v693 = vpop.f32.mrf.mxu0
        %694 = vdwg.mxu0
        %v695 = vadd.f32 %v612, %v692
        %v696 = vsel %vm341, %v695, 0.0
        %697 = vadd.xlane.f32.xlu0 %v696
        %v698 = vpop.xlane.xlu0 %697
        %v699 = vmul.f32 %v698, %v351
        %v700 = vsub.f32 %v695, %v699
        %v701 = vmul.f32 %v700, %v700
        %v702 = vsel %vm341, %v701, 0.0
        %703 = vadd.xlane.f32.xlu0 %v702
        %v704 = vpop.xlane.xlu0 %703
        %v705 = vmul.f32 %v704, %v351
        %v706 = vadd.f32 %v705, 1e-12
        %v707 = vrsqrt.pop %v706
        %v708 = vmul.f32 %v707, %v706
        %v709 = vmul.f32 %v708, %v707
        %v710 = vmul.f32 0.5, %v709
        %v711 = vsub.f32 1.5, %v710
        %v712 = vmul.f32 %v707, %v711
        %vm713 = vweird.f32 %v706
        %vm714 = vweird.f32 %v707
        %vm715 = vmor %vm713, %vm714
        %v716 = vsel %vm715, %v707, %v712
        %v717 = vmul.f32 %v700, %v716
        %v718 = vperm.slane %v376, 6
        %v719 = vmul.f32 %v717, %v718
        %v720 = vperm.slane %v376, 7
        %v721 = vadd.f32 %v719, %v720
        %s722 = scalar_lea.vmem [#allocation7], 8
        %v723 = vld [vmem:[%s722] sm:$0xff]
        %s724 = scalar_lea.vmem %s4, 48
        %v725 = vld [vmem:[%s724] sm:$0xff]
        %v726 = vld [vmem:[%s724 + $0x8] sm:$0xf]
        %v727 = vld [vmem:[%s724 + $0xc] sm:$0xff]
        %v728 = vld [vmem:[%s724 + $0x14] sm:$0xf]
        %v729 = vld [vmem:[%s724 + $0x18] sm:$0xff]
        %v730 = vld [vmem:[%s724 + $0x20] sm:$0xf]
        %v731 = vld [vmem:[%s724 + $0x24] sm:$0xff]
        %v732 = vld [vmem:[%s724 + $0x2c] sm:$0xf]
        %s733 = scalar_lea.vmem %s5, 32
        %v734 = vld [vmem:[%s733] sm:$0xf]
        %v735 = vld [vmem:[%s733 + $0x4] sm:$0xf]
        %v736 = vld [vmem:[%s733 + $0x8] sm:$0xf]
        %v737 = vld [vmem:[%s733 + $0xc] sm:$0xf]
        %v738 = vld [vmem:[%s733 + $0x10] sm:$0xf]
        %v739 = vld [vmem:[%s733 + $0x14] sm:$0xf]
        %v740 = vld [vmem:[%s733 + $0x18] sm:$0xf]
        %v741 = vld [vmem:[%s733 + $0x1c] sm:$0xf]
        %v742 = vpack.c.bf16 %v721, %v721
        %v743 = vperm.slane %v723, 0
        %v748 = vunpack.c.l.b16 %v725
        %v749 = vunpack.c.l.b16 %v727
        %v750 = vunpack.c.l.b16 %v729
        %v751 = vunpack.c.l.b16 %v731
        %v752 = vpack.c.b16 %v749, %v748
        %v753 = vpack.c.b16 %v751, %v750
        %v757 = vsel %vm341, %v742, 0
        %759 = vmatpush.bf16.msra.mxu0 0
        %760 = vmatpush.bf16.msra.mxu0 0
        %761 = vmatpush.bf16.msra.mxu0 0
        %762 = vmatpush.bf16.msra.mxu0 0
        %763 = vmatpush.bf16.msra.mxu0 0
        %764 = vmatpush.bf16.msra.mxu0 0
        %765 = vmatpush.bf16.msra.mxu0 %v753
        %766 = vmatpush.bf16.msra.mxu0 %v752
        %767 = vmatmul.bf16.gmra.mxu0 %v757
        %v768 = vpop.f32.mrf.mxu0
        %v769 = vadd.f32 %v743, %v768
        %v770 = vpop.f32.mrf.mxu0
        %771 = vdwg.mxu0
        %v772 = vpack.c.bf16 %v769, %v769
        %774 = vrot.lane.b32.xlu0 %v772, 96
        %v775 = vpop.permute.xlu0 %774
        %v777 = vsel %vm427, %v772, 0
        %v780 = vsel %vm427, %v775, 0
        %782 = vmatpush.bf16.xpose.msra.mxu0 0
        %783 = vmatpush.bf16.xpose.msra.mxu0 0
        %784 = vmatpush.bf16.xpose.msra.mxu0 0
        %785 = vmatpush.bf16.xpose.msra.mxu0 0
        %786 = vmatpush.bf16.xpose.msra.mxu0 0
        %787 = vmatpush.bf16.xpose.msra.mxu0 0
        %788 = vmatpush.bf16.xpose.msra.mxu0 0
        %789 = vmatpush.bf16.xpose.msra.mxu0 %v780
        %790 = vmatmul.bf16.gmra.mxu0 %v777
        %v791 = vpop.f32.mrf.mxu0
        %v792 = vadd.f32 0.0, %v791
        %v793 = vpop.f32.mrf.mxu0
        %794 = vdwg.mxu0
        %v795 = vmul.f32 %v792, 0.25
        %v796 = vadd.f32 %v795, %v375
        %v797 = vsel %vm449, %v796, -inf
        %798 = vmax.xlane.f32.xlu0 %v797
        %v799 = vpop.xlane.xlu0 %798
        %v800 = vsub.f32 %v796, %v799
        %v801 = vmul.f32 %v800, 1.442695
        %v802 = vpow.pop %v801
        %v803 = vsel %vm449, %v802, 0.0
        %804 = vadd.xlane.f32.xlu0 %v803
        %v805 = vpop.xlane.xlu0 %804
        %v806 = vrcp.pop %v805
        %v807 = vmul.f32 %v802, %v806
        %v808 = vpack.c.bf16 %v807, %v807
        %809 = vrot.lane.b32.xlu0 %v772, 64
        %v810 = vpop.permute.xlu0 %809
        %v812 = vsel %vm449, %v808, 0
        %v815 = vsel %vm467, %v810, 0
        %817 = vmatpush.bf16.msra.mxu0 0
        %818 = vmatpush.bf16.msra.mxu0 0
        %819 = vmatpush.bf16.msra.mxu0 0
        %820 = vmatpush.bf16.msra.mxu0 0
        %821 = vmatpush.bf16.msra.mxu0 0
        %822 = vmatpush.bf16.msra.mxu0 0
        %823 = vmatpush.bf16.msra.mxu0 0
        %824 = vmatpush.bf16.msra.mxu0 %v815
        %825 = vmatmul.bf16.gmra.mxu0 %v812
        %v826 = vpop.f32.mrf.mxu0
        %v827 = vadd.f32 0.0, %v826
        %v828 = vpop.f32.mrf.mxu0
        %829 = vdwg.mxu0
        %v830 = vpack.c.bf16 %v827, %v827
        %831 = vrot.lane.b32.xlu0 %v772, 112
        %v832 = vpop.permute.xlu0 %831
        %833 = vrot.lane.b32.xlu0 %v772, 80
        %v834 = vpop.permute.xlu0 %833
        %v836 = vsel %vm427, %v832, 0
        %v839 = vsel %vm427, %v834, 0
        %841 = vmatpush.bf16.xpose.msra.mxu0 0
        %842 = vmatpush.bf16.xpose.msra.mxu0 0
        %843 = vmatpush.bf16.xpose.msra.mxu0 0
        %844 = vmatpush.bf16.xpose.msra.mxu0 0
        %845 = vmatpush.bf16.xpose.msra.mxu0 0
        %846 = vmatpush.bf16.xpose.msra.mxu0 0
        %847 = vmatpush.bf16.xpose.msra.mxu0 0
        %848 = vmatpush.bf16.xpose.msra.mxu0 %v839
        %849 = vmatmul.bf16.gmra.mxu0 %v836
        %v850 = vpop.f32.mrf.mxu0
        %v851 = vadd.f32 0.0, %v850
        %v852 = vpop.f32.mrf.mxu0
        %853 = vdwg.mxu0
        %v854 = vmul.f32 %v851, 0.25
        %v855 = vadd.f32 %v854, %v375
        %v856 = vsel %vm449, %v855, -inf
        %857 = vmax.xlane.f32.xlu0 %v856
        %v858 = vpop.xlane.xlu0 %857
        %v859 = vsub.f32 %v855, %v858
        %v860 = vmul.f32 %v859, 1.442695
        %v861 = vpow.pop %v860
        %v862 = vsel %vm449, %v861, 0.0
        %863 = vadd.xlane.f32.xlu0 %v862
        %v864 = vpop.xlane.xlu0 %863
        %v865 = vrcp.pop %v864
        %v866 = vmul.f32 %v861, %v865
        %v867 = vpack.c.bf16 %v866, %v866
        %868 = vrot.lane.b32.xlu0 %v772, 48
        %v869 = vpop.permute.xlu0 %868
        %v871 = vsel %vm449, %v867, 0
        %v874 = vsel %vm467, %v869, 0
        %876 = vmatpush.bf16.msra.mxu0 0
        %877 = vmatpush.bf16.msra.mxu0 0
        %878 = vmatpush.bf16.msra.mxu0 0
        %879 = vmatpush.bf16.msra.mxu0 0
        %880 = vmatpush.bf16.msra.mxu0 0
        %881 = vmatpush.bf16.msra.mxu0 0
        %882 = vmatpush.bf16.msra.mxu0 0
        %883 = vmatpush.bf16.msra.mxu0 %v874
        %884 = vmatmul.bf16.gmra.mxu0 %v871
        %v885 = vpop.f32.mrf.mxu0
        %v886 = vadd.f32 0.0, %v885
        %v887 = vpop.f32.mrf.mxu0
        %888 = vdwg.mxu0
        %v889 = vpack.c.bf16 %v886, %v886
        %v890 = vunpack.c.h.b16 %v729
        %v891 = vunpack.c.h.b16 %v731
        %v892 = vpack.c.b16 %v891, %v890
        %v895 = vsel %vm427, %v889, 0
        %897 = vmatpush.bf16.msra.mxu0 0
        %898 = vmatpush.bf16.msra.mxu0 0
        %899 = vmatpush.bf16.msra.mxu0 0
        %900 = vmatpush.bf16.msra.mxu0 0
        %901 = vmatpush.bf16.msra.mxu0 0
        %902 = vmatpush.bf16.msra.mxu0 0
        %903 = vmatpush.bf16.msra.mxu0 0
        %904 = vmatpush.bf16.msra.mxu0 %v892
        %905 = vmatmul.bf16.gmra.mxu0 %v895
        %v906 = vpop.f32.mrf.mxu0
        %v907 = vadd.f32 0.0, %v906
        %v908 = vpop.f32.mrf.mxu0
        %909 = vdwg.mxu0
        %v910 = vunpack.c.h.b16 %v725
        %v911 = vunpack.c.h.b16 %v727
        %v912 = vpack.c.b16 %v911, %v910
        %v915 = vsel %vm427, %v830, 0
        %917 = vmatpush.bf16.msra.mxu0 0
        %918 = vmatpush.bf16.msra.mxu0 0
        %919 = vmatpush.bf16.msra.mxu0 0
        %920 = vmatpush.bf16.msra.mxu0 0
        %921 = vmatpush.bf16.msra.mxu0 0
        %922 = vmatpush.bf16.msra.mxu0 0
        %923 = vmatpush.bf16.msra.mxu0 0
        %924 = vmatpush.bf16.msra.mxu0 %v912
        %925 = vmatmul.bf16.gmra.mxu0 %v915
        %v926 = vpop.f32.mrf.mxu0
        %v927 = vadd.f32 %v907, %v926
        %v928 = vpop.f32.mrf.mxu0
        %929 = vdwg.mxu0
        %v930 = vadd.f32 %v721, %v927
        %v931 = vperm.slane %v723, 1
        %v932 = vadd.f32 %v930, %v931
        %v933 = vsel %vm341, %v932, 0.0
        %934 = vadd.xlane.f32.xlu0 %v933
        %v935 = vpop.xlane.xlu0 %934
        %v936 = vmul.f32 %v935, %v351
        %v937 = vsub.f32 %v932, %v936
        %v938 = vmul.f32 %v937, %v937
        %v939 = vsel %vm341, %v938, 0.0
        %940 = vadd.xlane.f32.xlu0 %v939
        %v941 = vpop.xlane.xlu0 %940
        %v942 = vmul.f32 %v941, %v351
        %v943 = vadd.f32 %v942, 1e-12
        %v944 = vrsqrt.pop %v943
        %v945 = vmul.f32 %v944, %v943
        %v946 = vmul.f32 %v945, %v944
        %v947 = vmul.f32 0.5, %v946
        %v948 = vsub.f32 1.5, %v947
        %v949 = vmul.f32 %v944, %v948
        %vm950 = vweird.f32 %v943
        %vm951 = vweird.f32 %v944
        %vm952 = vmor %vm950, %vm951
        %v953 = vsel %vm952, %v944, %v949
        %v954 = vmul.f32 %v937, %v953
        %v955 = vperm.slane %v723, 2
        %v956 = vmul.f32 %v954, %v955
        %v957 = vperm.slane %v723, 3
        %v958 = vadd.f32 %v956, %v957
        %v959 = vpack.c.bf16 %v958, %v958
        %v960 = vperm.slane %v723, 4
        %v965 = vunpack.c.l.b16 %v726
        %v966 = vunpack.c.l.b16 %v728
        %v967 = vunpack.c.l.b16 %v730
        %v968 = vunpack.c.l.b16 %v732
        %v969 = vpack.c.b16 %v966, %v965
        %v970 = vpack.c.b16 %v968, %v967
        %v974 = vsel %vm341, %v959, 0
        %976 = vmatpush.bf16.msra.mxu0 0
        %977 = vmatpush.bf16.msra.mxu0 0
        %978 = vmatpush.bf16.msra.mxu0 0
        %979 = vmatpush.bf16.msra.mxu0 0
        %980 = vmatpush.bf16.msra.mxu0 0
        %981 = vmatpush.bf16.msra.mxu0 0
        %982 = vmatpush.bf16.msra.mxu0 %v970
        %983 = vmatpush.bf16.msra.mxu0 %v969
        %984 = vmatmul.bf16.gmra.mxu0 %v974
        %v985 = vpop.f32.mrf.mxu0
        %v986 = vadd.f32 %v960, %v985
        %v987 = vpop.f32.mrf.mxu0
        %988 = vdwg.mxu0
        %v989 = vmul.f32 %v986, 0.5
        %v990 = vmul.f32 %v986, 0.044715
        %v991 = vmul.f32 %v990, %v986
        %v992 = vmul.f32 %v991, %v986
        %v993 = vadd.f32 %v986, %v992
        %v994 = vmul.f32 %v993, 0.7978846
        %v995 = vtanh.pop %v994
        %v996 = vadd.f32 %v995, 1.0
        %v997 = vmul.f32 %v989, %v996
        %v998 = vpack.c.bf16 %v997, %v997
        %v999 = vperm.slane %v723, 5
        %v1008 = vunpack.c.l.b16 %v734
        %v1009 = vunpack.c.l.b16 %v735
        %v1010 = vunpack.c.l.b16 %v736
        %v1011 = vunpack.c.l.b16 %v737
        %v1012 = vunpack.c.l.b16 %v738
        %v1013 = vunpack.c.l.b16 %v739
        %v1014 = vunpack.c.l.b16 %v740
        %v1015 = vunpack.c.l.b16 %v741
        %v1016 = vpack.c.b16 %v1009, %v1008
        %v1017 = vpack.c.b16 %v1011, %v1010
        %v1018 = vpack.c.b16 %v1013, %v1012
        %v1019 = vpack.c.b16 %v1015, %v1014
        %v1025 = vsel %vm678, %v998, 0
        %1027 = vmatpush.bf16.msra.mxu0 0
        %1028 = vmatpush.bf16.msra.mxu0 0
        %1029 = vmatpush.bf16.msra.mxu0 0
        %1030 = vmatpush.bf16.msra.mxu0 0
        %1031 = vmatpush.bf16.msra.mxu0 %v1019
        %1032 = vmatpush.bf16.msra.mxu0 %v1018
        %1033 = vmatpush.bf16.msra.mxu0 %v1017
        %1034 = vmatpush.bf16.msra.mxu0 %v1016
        %1035 = vmatmul.bf16.gmra.mxu0 %v1025
        %v1036 = vpop.f32.mrf.mxu0
        %v1037 = vadd.f32 %v999, %v1036
        %v1038 = vpop.f32.mrf.mxu0
        %1039 = vdwg.mxu0
        %v1040 = vadd.f32 %v958, %v1037
        %v1041 = vsel %vm341, %v1040, 0.0
        %1042 = vadd.xlane.f32.xlu0 %v1041
        %v1043 = vpop.xlane.xlu0 %1042
        %v1044 = vmul.f32 %v1043, %v351
        %v1045 = vsub.f32 %v1040, %v1044
        %v1046 = vmul.f32 %v1045, %v1045
        %v1047 = vsel %vm341, %v1046, 0.0
        %1048 = vadd.xlane.f32.xlu0 %v1047
        %v1049 = vpop.xlane.xlu0 %1048
        %v1050 = vmul.f32 %v1049, %v351
        %v1051 = vadd.f32 %v1050, 1e-12
        %v1052 = vrsqrt.pop %v1051
        %v1053 = vmul.f32 %v1052, %v1051
        %v1054 = vmul.f32 %v1053, %v1052
        %v1055 = vmul.f32 0.5, %v1054
        %v1056 = vsub.f32 1.5, %v1055
        %v1057 = vmul.f32 %v1052, %v1056
        %vm1058 = vweird.f32 %v1051
        %vm1059 = vweird.f32 %v1052
        %vm1060 = vmor %vm1058, %vm1059
        %v1061 = vsel %vm1060, %v1052, %v1057
        %v1062 = vmul.f32 %v1045, %v1061
        %v1063 = vperm.slane %v723, 6
        %v1064 = vmul.f32 %v1062, %v1063
        %v1065 = vperm.slane %v723, 7
        %v1066 = vadd.f32 %v1064, %v1065
        %v1067 = vld [vmem:[#allocation6 + $0x2] sm:$0x1]
        %v1068 = vld [vmem:[#allocation6 + $0x3] sm:$0x1]
        %v1069 = vmul.f32 %v1066, %v1067
        %vm1070 = vcmask 253952
        %v1071 = vsel %vm1070, %v1069, 0.0
        %1072 = vadd.xlane.f32.xlu0 %v1071
        %v1073 = vpop.xlane.xlu0 %1072
        %v1074 = vadd.f32 %v1073, %v1068
        %vm1075 = vcmask 0
        %1076 = vst.msk [vmem:[%s336] sm:$0x1] %vm1075, %v1074
        %p1077 = scmp.lt.s32.totalorder %s24, 1
        %s1078 = scalar_select %p1077, %s24, 1
        %s1079 = scalar_lea.vmem %s6, %s1078
        // Predicated region
        $region61: #{tpu_custom_call.1} parent=43 // pred_check
          %p1080 = pneg %p178
        $region62: #{tpu_custom_call.1} parent=43 // pred_check_branch
          %1082 = sbr.rel (%p1080) target = $region64
        $region63: #{tpu_custom_call.1} parent=43 // pred_region
          _
        $region64: #{tpu_custom_call.1} parent=43 // pred_fallthru
          _
      $region44: #{tpu_custom_call.1} parent=5 // pred_fallthru
        _
      %p1083 = scmp.le.s32.totalorder 2, %s19
      // Predicated region
      $region65: #{tpu_custom_call.1} parent=5 // pred_check
        %p1084 = pneg %p1083
      $region66: #{tpu_custom_call.1} parent=5 // pred_check_branch
        %1086 = sbr.rel (%p1084) target = $region68
      $region67: #{tpu_custom_call.1} parent=5 // pred_region
        %s1087 = ssub.s32 %s19, 2
        // Predicated region
        $region69: #{tpu_custom_call.1} parent=67 // pred_check
          %p1088 = pneg %p184
        $region70: #{tpu_custom_call.1} parent=67 // pred_check_branch
          %1090 = sbr.rel (%p1088) target = $region72
        $region71: #{tpu_custom_call.1} parent=67 // pred_region
          %p1091 = scmp.lt.s32.totalorder %s25, 1
          %s1092 = scalar_select %p1091, %s25, 1
          %s1093 = scalar_lea.vmem %s6, %s1092
        $region72: #{tpu_custom_call.1} parent=67 // pred_fallthru
          _
      $region68: #{tpu_custom_call.1} parent=5 // pred_fallthru
        _
    $region6: #{tpu_custom_call.1} parent=1 // loop_footer
      %s23 = sadd.s32 1, %s19
    $region7: #{tpu_custom_call.1} parent=1 // loop_footer_branch
      %18 = sbr.rel target = $region3
    $region8: #{tpu_custom_call.1} parent=1 // loop_exit
      _
    %1094 = vsyncpa [#allocation3], 1
    %s1095 = scalar_lea.sflag [#allocation3], 1
    %1096 = vsyncpa %s1095, 1
    %1097 = vsyncpa [#allocation5], 1
    %s1098 = scalar_lea.sflag [#allocation5], 1
    %1099 = vsyncpa %s1098, 1
    %1100 = vsyncpa [#allocation8], 1

</llo_original>
